<compile_context>
chip_gen: v5e
topology: v5e:2x2
jax: 0.10.0
libtpu: 0.0.40
codegen_flags: <defaults>
</compile_context>

<pallas_src>
import jax
import jax.numpy as jnp
from jax.experimental import pallas as pl
from jax.experimental.pallas import tpu as pltpu  # noqa: F401 (TPU backend)

# --- tiny "bert-base"-like config -------------------------------------------
B = 2            # batch
S = 8            # sequence length
H = 32           # hidden size
NH = 2           # attention heads
DH = H // NH     # head dim
FF = 4 * H       # intermediate (FFN) size
VOCAB = 100
N_LAYERS = 2
N_CLASSES = 3
LN_EPS = 1e-12
OUT_PAD = 128    # lane-dense padded logits width
BS = B * S       # batch*seq folded onto sublanes


# --- in-kernel helpers -------------------------------------------------------
def _ln(x, gamma, beta):
    mean = jnp.mean(x, axis=-1, keepdims=True)
    var = jnp.mean(jnp.square(x - mean), axis=-1, keepdims=True)
    inv = jax.lax.rsqrt(var + LN_EPS)
    return (x - mean) * inv * gamma + beta


# --- fused forward kernel ----------------------------------------------------
def fused_forward_kernel(x_ref, addmask_ref,
                         emb_g_ref, emb_b_ref,
                         wqkv_ref, bqkv_ref, wo_ref, bo_ref,
                         g1_ref, be1_ref, w1_ref, b1_ref,
                         w2_ref, b2_ref, g2_ref, be2_ref,
                         pw_ref, pb_ref, ow_ref, ob_ref,
                         o_ref):
    # x_ref: (BS, H) token embeddings (batch folded onto sublanes)
    x = _ln(x_ref[...].astype(jnp.float32), emb_g_ref[...], emb_b_ref[...])
    addmask = addmask_ref[...]                       # (BS, BS) additive mask
    scale = 1.0 / jnp.sqrt(jnp.float32(DH))

    for l in range(N_LAYERS):                        # static unroll over layers
        qkv = jnp.dot(x.astype(jnp.bfloat16), wqkv_ref[l],
                      preferred_element_type=jnp.float32) + bqkv_ref[l]

        # head-batched views: (NH, BS, DH)
        q = jnp.stack([qkv[:, h * DH:(h + 1) * DH] for h in range(NH)], axis=0)
        k = jnp.stack([qkv[:, H + h * DH:H + (h + 1) * DH]
                       for h in range(NH)], axis=0)
        v = jnp.stack([qkv[:, 2 * H + h * DH:2 * H + (h + 1) * DH]
                       for h in range(NH)], axis=0)

        scores = jnp.einsum('nqd,nkd->nqk',
                            q.astype(jnp.bfloat16), k.astype(jnp.bfloat16),
                            preferred_element_type=jnp.float32)
        scores = scores * scale + addmask[None, :, :]
        scores = scores - jnp.max(scores, axis=-1, keepdims=True)
        p = jnp.exp(scores)
        p = p * pl.reciprocal(jnp.sum(p, axis=-1, keepdims=True), approx=True)

        ctx = jnp.einsum('nqk,nkd->nqd',
                         p.astype(jnp.bfloat16), v.astype(jnp.bfloat16),
                         preferred_element_type=jnp.float32)      # (NH, BS, DH)
        ctx = jnp.concatenate([ctx[h] for h in range(NH)], axis=-1)  # (BS, H)

        attn = jnp.dot(ctx.astype(jnp.bfloat16), wo_ref[l],
                       preferred_element_type=jnp.float32) + bo_ref[l]
        y = _ln(x + attn, g1_ref[l], be1_ref[l])

        h1 = jnp.dot(y.astype(jnp.bfloat16), w1_ref[l],
                     preferred_element_type=jnp.float32) + b1_ref[l]
        h1 = jax.nn.gelu(h1, approximate=True)       # tanh-approx GELU
        h2 = jnp.dot(h1.astype(jnp.bfloat16), w2_ref[l],
                     preferred_element_type=jnp.float32) + b2_ref[l]
        x = _ln(y + h2, g2_ref[l], be2_ref[l])

    # BERT pooler + classification head, applied to all BS rows (the wrapper
    # keeps only the CLS rows).  nn.Dropout(p=0.3) is identity in inference.
    pooled = jnp.tanh(jnp.dot(x.astype(jnp.bfloat16), pw_ref[...],
                              preferred_element_type=jnp.float32) + pb_ref[...])
    o_ref[...] = jnp.dot(pooled.astype(jnp.bfloat16), ow_ref[...],
                         preferred_element_type=jnp.float32) + ob_ref[...]


# --- parameters (deterministic synthetic init; NOT a checkpoint) -------------
def init_params(key):
    ks = jax.random.split(key, 9)

    def nrm(k, shape, dtype=jnp.float32):
        return (jax.random.normal(k, shape, jnp.float32) * 0.02).astype(dtype)

    out_w = nrm(ks[8], (H, N_CLASSES))
    out_w_pad = jnp.pad(out_w, ((0, 0), (0, OUT_PAD - N_CLASSES)))

    return {
        "word_emb": nrm(ks[0], (VOCAB, H)),
        "pos_emb": nrm(ks[1], (S, H)),
        "type_emb": nrm(ks[2], (2, H)),
        "emb_ln_g": jnp.ones((1, H), jnp.float32),
        "emb_ln_b": jnp.zeros((1, H), jnp.float32),
        # stacked per-layer parameters; weight matrices in bf16 (MXU-native)
        "wqkv": nrm(ks[3], (N_LAYERS, H, 3 * H), jnp.bfloat16),
        "bqkv": jnp.zeros((N_LAYERS, 1, 3 * H), jnp.float32),
        "wo": nrm(ks[4], (N_LAYERS, H, H), jnp.bfloat16),
        "bo": jnp.zeros((N_LAYERS, 1, H), jnp.float32),
        "ln1_g": jnp.ones((N_LAYERS, 1, H), jnp.float32),
        "ln1_b": jnp.zeros((N_LAYERS, 1, H), jnp.float32),
        "w1": nrm(ks[5], (N_LAYERS, H, FF), jnp.bfloat16),
        "b1": jnp.zeros((N_LAYERS, 1, FF), jnp.float32),
        "w2": nrm(ks[6], (N_LAYERS, FF, H), jnp.bfloat16),
        "b2": jnp.zeros((N_LAYERS, 1, H), jnp.float32),
        "ln2_g": jnp.ones((N_LAYERS, 1, H), jnp.float32),
        "ln2_b": jnp.zeros((N_LAYERS, 1, H), jnp.float32),
        "pool_w": nrm(ks[7], (H, H), jnp.bfloat16),
        "pool_b": jnp.zeros((1, H), jnp.float32),
        "out_w": out_w_pad.astype(jnp.bfloat16),      # (H, OUT_PAD), zero-padded
        "out_b": jnp.zeros((1, OUT_PAD), jnp.float32),
    }


# --- forward = SentimentClassifier.forward(input_ids, attention_mask) --------
def forward(params, input_ids, attention_mask):
    # Embedding lookups are gather glue in plain JAX; everything else is the
    # fused Pallas kernel.
    x = jnp.take(params["word_emb"], input_ids, axis=0)          # (B, S, H)
    x = x + params["pos_emb"][None, :, :]
    x = x + params["type_emb"][0][None, None, :]                 # token_type=0
    x_flat = x.reshape(BS, H)

    # Fold (B, S) into one token axis: allow attention only within the same
    # batch element and only to valid (unpadded) keys.
    batch_id = jnp.repeat(jnp.arange(B, dtype=jnp.int32), S)     # (BS,)
    key_valid = attention_mask.reshape(BS) > 0
    allowed = (batch_id[:, None] == batch_id[None, :]) & key_valid[None, :]
    addmask = jnp.where(allowed, 0.0, -1e9).astype(jnp.float32)  # (BS, BS)

    out_full = pl.pallas_call(
        fused_forward_kernel,
        out_shape=jax.ShapeDtypeStruct((BS, OUT_PAD), jnp.float32),
    )(x_flat, addmask,
      params["emb_ln_g"], params["emb_ln_b"],
      params["wqkv"], params["bqkv"], params["wo"], params["bo"],
      params["ln1_g"], params["ln1_b"], params["w1"], params["b1"],
      params["w2"], params["b2"], params["ln2_g"], params["ln2_b"],
      params["pool_w"], params["pool_b"], params["out_w"], params["out_b"])

    # CLS rows are at token indices b*S; keep the first N_CLASSES logits.
    return out_full[::S, :N_CLASSES]                             # (B, N_CLASSES)


if __name__ == "__main__":
    key = jax.random.PRNGKey(0)
    pkey, ikey = jax.random.split(key)
    params = init_params(pkey)

    input_ids = jax.random.randint(ikey, (B, S), 0, VOCAB, dtype=jnp.int32)
    lengths = jnp.array([S, S - 3], dtype=jnp.int32)
    attention_mask = (jnp.arange(S)[None, :] < lengths[:, None]).astype(jnp.int32)

    logits = jax.jit(forward)(params, input_ids, attention_mask)
    jax.block_until_ready(logits)
    assert logits.shape == (B, N_CLASSES)
    assert bool(jnp.all(jnp.isfinite(logits)))
    print("KERNEL_OK")
</pallas_src>

<mosaic_0001>
module attributes {stable_mosaic.version = 11 : i64} {
  func.func @fused_forward_kernel(%arg0: memref<16x32xf32, #tpu.memory_space<vmem>>, %arg1: memref<16x16xf32, #tpu.memory_space<vmem>>, %arg2: memref<1x32xf32, #tpu.memory_space<vmem>>, %arg3: memref<1x32xf32, #tpu.memory_space<vmem>>, %arg4: memref<2x32x96xbf16, #tpu.memory_space<vmem>>, %arg5: memref<2x1x96xf32, #tpu.memory_space<vmem>>, %arg6: memref<2x32x32xbf16, #tpu.memory_space<vmem>>, %arg7: memref<2x1x32xf32, #tpu.memory_space<vmem>>, %arg8: memref<2x1x32xf32, #tpu.memory_space<vmem>>, %arg9: memref<2x1x32xf32, #tpu.memory_space<vmem>>, %arg10: memref<2x32x128xbf16, #tpu.memory_space<vmem>>, %arg11: memref<2x1x128xf32, #tpu.memory_space<vmem>>, %arg12: memref<2x128x32xbf16, #tpu.memory_space<vmem>>, %arg13: memref<2x1x32xf32, #tpu.memory_space<vmem>>, %arg14: memref<2x1x32xf32, #tpu.memory_space<vmem>>, %arg15: memref<2x1x32xf32, #tpu.memory_space<vmem>>, %arg16: memref<32x32xbf16, #tpu.memory_space<vmem>>, %arg17: memref<1x32xf32, #tpu.memory_space<vmem>>, %arg18: memref<32x128xbf16, #tpu.memory_space<vmem>>, %arg19: memref<1x128xf32, #tpu.memory_space<vmem>>, %arg20: memref<16x128xf32, #tpu.memory_space<vmem>>) attributes {dimension_semantics = [], scalar_prefetch = 0 : i64, scratch_operands = 0 : i64, tpu.core_type = #tpu.core_type<tc>} {
    %c0 = arith.constant 0 : index
    %c0_0 = arith.constant 0 : index
    %0 = vector.load %arg0[%c0, %c0_0] : memref<16x32xf32, #tpu.memory_space<vmem>>, vector<16x32xf32>
    %c0_1 = arith.constant 0 : index
    %c0_2 = arith.constant 0 : index
    %1 = vector.load %arg2[%c0_1, %c0_2] : memref<1x32xf32, #tpu.memory_space<vmem>>, vector<1x32xf32>
    %c0_3 = arith.constant 0 : index
    %c0_4 = arith.constant 0 : index
    %2 = vector.load %arg3[%c0_3, %c0_4] : memref<1x32xf32, #tpu.memory_space<vmem>>, vector<1x32xf32>
    %cst = arith.constant dense<0.000000e+00> : vector<16xf32>
    %3 = vector.multi_reduction <add>, %0, %cst [1] : vector<16x32xf32> to vector<16xf32>
    %4 = vector.shape_cast %3 : vector<16xf32> to vector<16x1xf32>
    %cst_5 = arith.constant 3.200000e+01 : f32
    %5 = vector.broadcast %cst_5 : f32 to vector<16x1xf32>
    %6 = arith.divf %4, %5 : vector<16x1xf32>
    %7 = vector.broadcast %6 : vector<16x1xf32> to vector<16x32xf32>
    %8 = arith.subf %0, %7 : vector<16x32xf32>
    %9 = arith.mulf %8, %8 : vector<16x32xf32>
    %cst_6 = arith.constant dense<0.000000e+00> : vector<16xf32>
    %10 = vector.multi_reduction <add>, %9, %cst_6 [1] : vector<16x32xf32> to vector<16xf32>
    %11 = vector.shape_cast %10 : vector<16xf32> to vector<16x1xf32>
    %cst_7 = arith.constant 3.200000e+01 : f32
    %12 = vector.broadcast %cst_7 : f32 to vector<16x1xf32>
    %13 = arith.divf %11, %12 : vector<16x1xf32>
    %cst_8 = arith.constant 9.99999996E-13 : f32
    %14 = vector.broadcast %cst_8 : f32 to vector<16x1xf32>
    %15 = arith.addf %13, %14 : vector<16x1xf32>
    %16 = math.rsqrt %15 : vector<16x1xf32>
    %17 = vector.broadcast %6 : vector<16x1xf32> to vector<16x32xf32>
    %18 = arith.subf %0, %17 : vector<16x32xf32>
    %19 = vector.broadcast %16 : vector<16x1xf32> to vector<16x32xf32>
    %20 = arith.mulf %18, %19 : vector<16x32xf32>
    %21 = vector.broadcast %1 : vector<1x32xf32> to vector<16x32xf32>
    %22 = arith.mulf %20, %21 : vector<16x32xf32>
    %23 = vector.broadcast %2 : vector<1x32xf32> to vector<16x32xf32>
    %24 = arith.addf %22, %23 : vector<16x32xf32>
    %c0_9 = arith.constant 0 : index
    %c0_10 = arith.constant 0 : index
    %25 = vector.load %arg1[%c0_9, %c0_10] : memref<16x16xf32, #tpu.memory_space<vmem>>, vector<16x16xf32>
    %cst_11 = arith.constant 1.600000e+01 : f32
    %26 = math.sqrt %cst_11 : f32
    %cst_12 = arith.constant 1.000000e+00 : f32
    %27 = arith.divf %cst_12, %26 : f32
    %28 = arith.truncf %24 : vector<16x32xf32> to vector<16x32xbf16>
    %c0_13 = arith.constant 0 : index
    %c0_14 = arith.constant 0 : index
    %c0_15 = arith.constant 0 : index
    %29 = vector.load %arg4[%c0_13, %c0_14, %c0_15] : memref<2x32x96xbf16, #tpu.memory_space<vmem>>, vector<1x32x96xbf16>
    %30 = vector.shape_cast %29 : vector<1x32x96xbf16> to vector<32x96xbf16>
    %cst_16 = arith.constant dense<0.000000e+00> : vector<16x96xf32>
    %31 = tpu.matmul %28, %30, %cst_16 {dimension_numbers = #tpu.dot_dimension_numbers<[1], [0], [0], [1], [0, 0, 1, 1], [], []>} : vector<16x32xbf16>, vector<32x96xbf16>, vector<16x96xf32> -> vector<16x96xf32>
    %c0_17 = arith.constant 0 : index
    %c0_18 = arith.constant 0 : index
    %c0_19 = arith.constant 0 : index
    %32 = vector.load %arg5[%c0_17, %c0_18, %c0_19] : memref<2x1x96xf32, #tpu.memory_space<vmem>>, vector<1x1x96xf32>
    %33 = vector.shape_cast %32 : vector<1x1x96xf32> to vector<1x96xf32>
    %34 = vector.broadcast %33 : vector<1x96xf32> to vector<16x96xf32>
    %35 = arith.addf %31, %34 : vector<16x96xf32>
    %36 = vector.extract_strided_slice %35 {offsets = [0, 0], sizes = [16, 16], strides = [1, 1]} : vector<16x96xf32> to vector<16x16xf32>
    %37 = vector.extract_strided_slice %35 {offsets = [0, 16], sizes = [16, 16], strides = [1, 1]} : vector<16x96xf32> to vector<16x16xf32>
    %38 = vector.shape_cast %36 : vector<16x16xf32> to vector<1x16x16xf32>
    %39 = vector.shape_cast %37 : vector<16x16xf32> to vector<1x16x16xf32>
    %40 = tpu.concatenate %38, %39 in 0 : vector<1x16x16xf32>, vector<1x16x16xf32> -> vector<2x16x16xf32>
    %41 = vector.extract_strided_slice %35 {offsets = [0, 32], sizes = [16, 16], strides = [1, 1]} : vector<16x96xf32> to vector<16x16xf32>
    %42 = vector.extract_strided_slice %35 {offsets = [0, 48], sizes = [16, 16], strides = [1, 1]} : vector<16x96xf32> to vector<16x16xf32>
    %43 = vector.shape_cast %41 : vector<16x16xf32> to vector<1x16x16xf32>
    %44 = vector.shape_cast %42 : vector<16x16xf32> to vector<1x16x16xf32>
    %45 = tpu.concatenate %43, %44 in 0 : vector<1x16x16xf32>, vector<1x16x16xf32> -> vector<2x16x16xf32>
    %46 = vector.extract_strided_slice %35 {offsets = [0, 64], sizes = [16, 16], strides = [1, 1]} : vector<16x96xf32> to vector<16x16xf32>
    %47 = vector.extract_strided_slice %35 {offsets = [0, 80], sizes = [16, 16], strides = [1, 1]} : vector<16x96xf32> to vector<16x16xf32>
    %48 = vector.shape_cast %46 : vector<16x16xf32> to vector<1x16x16xf32>
    %49 = vector.shape_cast %47 : vector<16x16xf32> to vector<1x16x16xf32>
    %50 = tpu.concatenate %48, %49 in 0 : vector<1x16x16xf32>, vector<1x16x16xf32> -> vector<2x16x16xf32>
    %51 = arith.truncf %40 : vector<2x16x16xf32> to vector<2x16x16xbf16>
    %52 = arith.truncf %45 : vector<2x16x16xf32> to vector<2x16x16xbf16>
    "tpu.trace_start"() <{level = 10 : i32, message = "nqd,nkd->nqk"}> : () -> ()
    %cst_20 = arith.constant dense<0.000000e+00> : vector<2x16x16xf32>
    %53 = tpu.matmul %51, %52, %cst_20 {dimension_numbers = #tpu.dot_dimension_numbers<[2], [2], [1], [1], [0, 0, 0, 1, 1, 1], [0], [0]>} : vector<2x16x16xbf16>, vector<2x16x16xbf16>, vector<2x16x16xf32> -> vector<2x16x16xf32>
    "tpu.trace_stop"() : () -> ()
    %54 = vector.broadcast %27 : f32 to vector<2x16x16xf32>
    %55 = arith.mulf %53, %54 : vector<2x16x16xf32>
    %56 = vector.shape_cast %25 : vector<16x16xf32> to vector<1x16x16xf32>
    %57 = vector.broadcast %56 : vector<1x16x16xf32> to vector<2x16x16xf32>
    %58 = arith.addf %55, %57 : vector<2x16x16xf32>
    %cst_21 = arith.constant dense<0xFF800000> : vector<2x16xf32>
    %59 = vector.multi_reduction <maximumf>, %58, %cst_21 [2] : vector<2x16x16xf32> to vector<2x16xf32>
    %60 = vector.shape_cast %59 : vector<2x16xf32> to vector<2x16x1xf32>
    %61 = vector.broadcast %60 : vector<2x16x1xf32> to vector<2x16x16xf32>
    %62 = arith.subf %58, %61 : vector<2x16x16xf32>
    %63 = math.exp %62 : vector<2x16x16xf32>
    %cst_22 = arith.constant dense<0.000000e+00> : vector<2x16xf32>
    %64 = vector.multi_reduction <add>, %63, %cst_22 [2] : vector<2x16x16xf32> to vector<2x16xf32>
    %65 = vector.shape_cast %64 : vector<2x16xf32> to vector<2x16x1xf32>
    %66 = tpu.reciprocal %65 {approx = true} : vector<2x16x1xf32> -> vector<2x16x1xf32>
    %67 = vector.broadcast %66 : vector<2x16x1xf32> to vector<2x16x16xf32>
    %68 = arith.mulf %63, %67 : vector<2x16x16xf32>
    %69 = arith.truncf %68 : vector<2x16x16xf32> to vector<2x16x16xbf16>
    %70 = arith.truncf %50 : vector<2x16x16xf32> to vector<2x16x16xbf16>
    "tpu.trace_start"() <{level = 10 : i32, message = "nqk,nkd->nqd"}> : () -> ()
    %cst_23 = arith.constant dense<0.000000e+00> : vector<2x16x16xf32>
    %71 = tpu.matmul %69, %70, %cst_23 {dimension_numbers = #tpu.dot_dimension_numbers<[2], [1], [1], [2], [0, 0, 0, 1, 1, 2], [0], [0]>} : vector<2x16x16xbf16>, vector<2x16x16xbf16>, vector<2x16x16xf32> -> vector<2x16x16xf32>
    "tpu.trace_stop"() : () -> ()
    %72 = vector.extract_strided_slice %71 {offsets = [0, 0, 0], sizes = [1, 16, 16], strides = [1, 1, 1]} : vector<2x16x16xf32> to vector<1x16x16xf32>
    %73 = vector.shape_cast %72 : vector<1x16x16xf32> to vector<16x16xf32>
    %74 = vector.extract_strided_slice %71 {offsets = [1, 0, 0], sizes = [1, 16, 16], strides = [1, 1, 1]} : vector<2x16x16xf32> to vector<1x16x16xf32>
    %75 = vector.shape_cast %74 : vector<1x16x16xf32> to vector<16x16xf32>
    %76 = tpu.concatenate %73, %75 in 1 : vector<16x16xf32>, vector<16x16xf32> -> vector<16x32xf32>
    %77 = arith.truncf %76 : vector<16x32xf32> to vector<16x32xbf16>
    %c0_24 = arith.constant 0 : index
    %c0_25 = arith.constant 0 : index
    %c0_26 = arith.constant 0 : index
    %78 = vector.load %arg6[%c0_24, %c0_25, %c0_26] : memref<2x32x32xbf16, #tpu.memory_space<vmem>>, vector<1x32x32xbf16>
    %79 = vector.shape_cast %78 : vector<1x32x32xbf16> to vector<32x32xbf16>
    %cst_27 = arith.constant dense<0.000000e+00> : vector<16x32xf32>
    %80 = tpu.matmul %77, %79, %cst_27 {dimension_numbers = #tpu.dot_dimension_numbers<[1], [0], [0], [1], [0, 0, 1, 1], [], []>} : vector<16x32xbf16>, vector<32x32xbf16>, vector<16x32xf32> -> vector<16x32xf32>
    %c0_28 = arith.constant 0 : index
    %c0_29 = arith.constant 0 : index
    %c0_30 = arith.constant 0 : index
    %81 = vector.load %arg7[%c0_28, %c0_29, %c0_30] : memref<2x1x32xf32, #tpu.memory_space<vmem>>, vector<1x1x32xf32>
    %82 = vector.shape_cast %81 : vector<1x1x32xf32> to vector<1x32xf32>
    %83 = vector.broadcast %82 : vector<1x32xf32> to vector<16x32xf32>
    %84 = arith.addf %80, %83 : vector<16x32xf32>
    %85 = arith.addf %24, %84 : vector<16x32xf32>
    %c0_31 = arith.constant 0 : index
    %c0_32 = arith.constant 0 : index
    %c0_33 = arith.constant 0 : index
    %86 = vector.load %arg8[%c0_31, %c0_32, %c0_33] : memref<2x1x32xf32, #tpu.memory_space<vmem>>, vector<1x1x32xf32>
    %87 = vector.shape_cast %86 : vector<1x1x32xf32> to vector<1x32xf32>
    %c0_34 = arith.constant 0 : index
    %c0_35 = arith.constant 0 : index
    %c0_36 = arith.constant 0 : index
    %88 = vector.load %arg9[%c0_34, %c0_35, %c0_36] : memref<2x1x32xf32, #tpu.memory_space<vmem>>, vector<1x1x32xf32>
    %89 = vector.shape_cast %88 : vector<1x1x32xf32> to vector<1x32xf32>
    %cst_37 = arith.constant dense<0.000000e+00> : vector<16xf32>
    %90 = vector.multi_reduction <add>, %85, %cst_37 [1] : vector<16x32xf32> to vector<16xf32>
    %91 = vector.shape_cast %90 : vector<16xf32> to vector<16x1xf32>
    %cst_38 = arith.constant 3.200000e+01 : f32
    %92 = vector.broadcast %cst_38 : f32 to vector<16x1xf32>
    %93 = arith.divf %91, %92 : vector<16x1xf32>
    %94 = vector.broadcast %93 : vector<16x1xf32> to vector<16x32xf32>
    %95 = arith.subf %85, %94 : vector<16x32xf32>
    %96 = arith.mulf %95, %95 : vector<16x32xf32>
    %cst_39 = arith.constant dense<0.000000e+00> : vector<16xf32>
    %97 = vector.multi_reduction <add>, %96, %cst_39 [1] : vector<16x32xf32> to vector<16xf32>
    %98 = vector.shape_cast %97 : vector<16xf32> to vector<16x1xf32>
    %cst_40 = arith.constant 3.200000e+01 : f32
    %99 = vector.broadcast %cst_40 : f32 to vector<16x1xf32>
    %100 = arith.divf %98, %99 : vector<16x1xf32>
    %cst_41 = arith.constant 9.99999996E-13 : f32
    %101 = vector.broadcast %cst_41 : f32 to vector<16x1xf32>
    %102 = arith.addf %100, %101 : vector<16x1xf32>
    %103 = math.rsqrt %102 : vector<16x1xf32>
    %104 = vector.broadcast %93 : vector<16x1xf32> to vector<16x32xf32>
    %105 = arith.subf %85, %104 : vector<16x32xf32>
    %106 = vector.broadcast %103 : vector<16x1xf32> to vector<16x32xf32>
    %107 = arith.mulf %105, %106 : vector<16x32xf32>
    %108 = vector.broadcast %87 : vector<1x32xf32> to vector<16x32xf32>
    %109 = arith.mulf %107, %108 : vector<16x32xf32>
    %110 = vector.broadcast %89 : vector<1x32xf32> to vector<16x32xf32>
    %111 = arith.addf %109, %110 : vector<16x32xf32>
    %112 = arith.truncf %111 : vector<16x32xf32> to vector<16x32xbf16>
    %c0_42 = arith.constant 0 : index
    %c0_43 = arith.constant 0 : index
    %c0_44 = arith.constant 0 : index
    %113 = vector.load %arg10[%c0_42, %c0_43, %c0_44] : memref<2x32x128xbf16, #tpu.memory_space<vmem>>, vector<1x32x128xbf16>
    %114 = vector.shape_cast %113 : vector<1x32x128xbf16> to vector<32x128xbf16>
    %cst_45 = arith.constant dense<0.000000e+00> : vector<16x128xf32>
    %115 = tpu.matmul %112, %114, %cst_45 {dimension_numbers = #tpu.dot_dimension_numbers<[1], [0], [0], [1], [0, 0, 1, 1], [], []>} : vector<16x32xbf16>, vector<32x128xbf16>, vector<16x128xf32> -> vector<16x128xf32>
    %c0_46 = arith.constant 0 : index
    %c0_47 = arith.constant 0 : index
    %c0_48 = arith.constant 0 : index
    %116 = vector.load %arg11[%c0_46, %c0_47, %c0_48] : memref<2x1x128xf32, #tpu.memory_space<vmem>>, vector<1x1x128xf32>
    %117 = vector.shape_cast %116 : vector<1x1x128xf32> to vector<1x128xf32>
    %118 = vector.broadcast %117 : vector<1x128xf32> to vector<16x128xf32>
    %119 = arith.addf %115, %118 : vector<16x128xf32>
    %120 = arith.mulf %119, %119 : vector<16x128xf32>
    %121 = arith.mulf %119, %120 : vector<16x128xf32>
    %cst_49 = arith.constant 4.471500e-02 : f32
    %122 = vector.broadcast %cst_49 : f32 to vector<16x128xf32>
    %123 = arith.mulf %122, %121 : vector<16x128xf32>
    %124 = arith.addf %119, %123 : vector<16x128xf32>
    %cst_50 = arith.constant 0.797884583 : f32
    %125 = vector.broadcast %cst_50 : f32 to vector<16x128xf32>
    %126 = arith.mulf %125, %124 : vector<16x128xf32>
    %127 = math.tanh %126 : vector<16x128xf32>
    %cst_51 = arith.constant 1.000000e+00 : f32
    %128 = vector.broadcast %cst_51 : f32 to vector<16x128xf32>
    %129 = arith.addf %128, %127 : vector<16x128xf32>
    %cst_52 = arith.constant 5.000000e-01 : f32
    %130 = vector.broadcast %cst_52 : f32 to vector<16x128xf32>
    %131 = arith.mulf %130, %129 : vector<16x128xf32>
    %132 = arith.mulf %119, %131 : vector<16x128xf32>
    %133 = arith.truncf %132 : vector<16x128xf32> to vector<16x128xbf16>
    %c0_53 = arith.constant 0 : index
    %c0_54 = arith.constant 0 : index
    %c0_55 = arith.constant 0 : index
    %134 = vector.load %arg12[%c0_53, %c0_54, %c0_55] : memref<2x128x32xbf16, #tpu.memory_space<vmem>>, vector<1x128x32xbf16>
    %135 = vector.shape_cast %134 : vector<1x128x32xbf16> to vector<128x32xbf16>
    %cst_56 = arith.constant dense<0.000000e+00> : vector<16x32xf32>
    %136 = tpu.matmul %133, %135, %cst_56 {dimension_numbers = #tpu.dot_dimension_numbers<[1], [0], [0], [1], [0, 0, 1, 1], [], []>} : vector<16x128xbf16>, vector<128x32xbf16>, vector<16x32xf32> -> vector<16x32xf32>
    %c0_57 = arith.constant 0 : index
    %c0_58 = arith.constant 0 : index
    %c0_59 = arith.constant 0 : index
    %137 = vector.load %arg13[%c0_57, %c0_58, %c0_59] : memref<2x1x32xf32, #tpu.memory_space<vmem>>, vector<1x1x32xf32>
    %138 = vector.shape_cast %137 : vector<1x1x32xf32> to vector<1x32xf32>
    %139 = vector.broadcast %138 : vector<1x32xf32> to vector<16x32xf32>
    %140 = arith.addf %136, %139 : vector<16x32xf32>
    %141 = arith.addf %111, %140 : vector<16x32xf32>
    %c0_60 = arith.constant 0 : index
    %c0_61 = arith.constant 0 : index
    %c0_62 = arith.constant 0 : index
    %142 = vector.load %arg14[%c0_60, %c0_61, %c0_62] : memref<2x1x32xf32, #tpu.memory_space<vmem>>, vector<1x1x32xf32>
    %143 = vector.shape_cast %142 : vector<1x1x32xf32> to vector<1x32xf32>
    %c0_63 = arith.constant 0 : index
    %c0_64 = arith.constant 0 : index
    %c0_65 = arith.constant 0 : index
    %144 = vector.load %arg15[%c0_63, %c0_64, %c0_65] : memref<2x1x32xf32, #tpu.memory_space<vmem>>, vector<1x1x32xf32>
    %145 = vector.shape_cast %144 : vector<1x1x32xf32> to vector<1x32xf32>
    %cst_66 = arith.constant dense<0.000000e+00> : vector<16xf32>
    %146 = vector.multi_reduction <add>, %141, %cst_66 [1] : vector<16x32xf32> to vector<16xf32>
    %147 = vector.shape_cast %146 : vector<16xf32> to vector<16x1xf32>
    %cst_67 = arith.constant 3.200000e+01 : f32
    %148 = vector.broadcast %cst_67 : f32 to vector<16x1xf32>
    %149 = arith.divf %147, %148 : vector<16x1xf32>
    %150 = vector.broadcast %149 : vector<16x1xf32> to vector<16x32xf32>
    %151 = arith.subf %141, %150 : vector<16x32xf32>
    %152 = arith.mulf %151, %151 : vector<16x32xf32>
    %cst_68 = arith.constant dense<0.000000e+00> : vector<16xf32>
    %153 = vector.multi_reduction <add>, %152, %cst_68 [1] : vector<16x32xf32> to vector<16xf32>
    %154 = vector.shape_cast %153 : vector<16xf32> to vector<16x1xf32>
    %cst_69 = arith.constant 3.200000e+01 : f32
    %155 = vector.broadcast %cst_69 : f32 to vector<16x1xf32>
    %156 = arith.divf %154, %155 : vector<16x1xf32>
    %cst_70 = arith.constant 9.99999996E-13 : f32
    %157 = vector.broadcast %cst_70 : f32 to vector<16x1xf32>
    %158 = arith.addf %156, %157 : vector<16x1xf32>
    %159 = math.rsqrt %158 : vector<16x1xf32>
    %160 = vector.broadcast %149 : vector<16x1xf32> to vector<16x32xf32>
    %161 = arith.subf %141, %160 : vector<16x32xf32>
    %162 = vector.broadcast %159 : vector<16x1xf32> to vector<16x32xf32>
    %163 = arith.mulf %161, %162 : vector<16x32xf32>
    %164 = vector.broadcast %143 : vector<1x32xf32> to vector<16x32xf32>
    %165 = arith.mulf %163, %164 : vector<16x32xf32>
    %166 = vector.broadcast %145 : vector<1x32xf32> to vector<16x32xf32>
    %167 = arith.addf %165, %166 : vector<16x32xf32>
    %168 = arith.truncf %167 : vector<16x32xf32> to vector<16x32xbf16>
    %c1 = arith.constant 1 : index
    %c0_71 = arith.constant 0 : index
    %c0_72 = arith.constant 0 : index
    %169 = vector.load %arg4[%c1, %c0_71, %c0_72] : memref<2x32x96xbf16, #tpu.memory_space<vmem>>, vector<1x32x96xbf16>
    %170 = vector.shape_cast %169 : vector<1x32x96xbf16> to vector<32x96xbf16>
    %cst_73 = arith.constant dense<0.000000e+00> : vector<16x96xf32>
    %171 = tpu.matmul %168, %170, %cst_73 {dimension_numbers = #tpu.dot_dimension_numbers<[1], [0], [0], [1], [0, 0, 1, 1], [], []>} : vector<16x32xbf16>, vector<32x96xbf16>, vector<16x96xf32> -> vector<16x96xf32>
    %c1_74 = arith.constant 1 : index
    %c0_75 = arith.constant 0 : index
    %c0_76 = arith.constant 0 : index
    %172 = vector.load %arg5[%c1_74, %c0_75, %c0_76] : memref<2x1x96xf32, #tpu.memory_space<vmem>>, vector<1x1x96xf32>
    %173 = vector.shape_cast %172 : vector<1x1x96xf32> to vector<1x96xf32>
    %174 = vector.broadcast %173 : vector<1x96xf32> to vector<16x96xf32>
    %175 = arith.addf %171, %174 : vector<16x96xf32>
    %176 = vector.extract_strided_slice %175 {offsets = [0, 0], sizes = [16, 16], strides = [1, 1]} : vector<16x96xf32> to vector<16x16xf32>
    %177 = vector.extract_strided_slice %175 {offsets = [0, 16], sizes = [16, 16], strides = [1, 1]} : vector<16x96xf32> to vector<16x16xf32>
    %178 = vector.shape_cast %176 : vector<16x16xf32> to vector<1x16x16xf32>
    %179 = vector.shape_cast %177 : vector<16x16xf32> to vector<1x16x16xf32>
    %180 = tpu.concatenate %178, %179 in 0 : vector<1x16x16xf32>, vector<1x16x16xf32> -> vector<2x16x16xf32>
    %181 = vector.extract_strided_slice %175 {offsets = [0, 32], sizes = [16, 16], strides = [1, 1]} : vector<16x96xf32> to vector<16x16xf32>
    %182 = vector.extract_strided_slice %175 {offsets = [0, 48], sizes = [16, 16], strides = [1, 1]} : vector<16x96xf32> to vector<16x16xf32>
    %183 = vector.shape_cast %181 : vector<16x16xf32> to vector<1x16x16xf32>
    %184 = vector.shape_cast %182 : vector<16x16xf32> to vector<1x16x16xf32>
    %185 = tpu.concatenate %183, %184 in 0 : vector<1x16x16xf32>, vector<1x16x16xf32> -> vector<2x16x16xf32>
    %186 = vector.extract_strided_slice %175 {offsets = [0, 64], sizes = [16, 16], strides = [1, 1]} : vector<16x96xf32> to vector<16x16xf32>
    %187 = vector.extract_strided_slice %175 {offsets = [0, 80], sizes = [16, 16], strides = [1, 1]} : vector<16x96xf32> to vector<16x16xf32>
    %188 = vector.shape_cast %186 : vector<16x16xf32> to vector<1x16x16xf32>
    %189 = vector.shape_cast %187 : vector<16x16xf32> to vector<1x16x16xf32>
    %190 = tpu.concatenate %188, %189 in 0 : vector<1x16x16xf32>, vector<1x16x16xf32> -> vector<2x16x16xf32>
    %191 = arith.truncf %180 : vector<2x16x16xf32> to vector<2x16x16xbf16>
    %192 = arith.truncf %185 : vector<2x16x16xf32> to vector<2x16x16xbf16>
    "tpu.trace_start"() <{level = 10 : i32, message = "nqd,nkd->nqk"}> : () -> ()
    %cst_77 = arith.constant dense<0.000000e+00> : vector<2x16x16xf32>
    %193 = tpu.matmul %191, %192, %cst_77 {dimension_numbers = #tpu.dot_dimension_numbers<[2], [2], [1], [1], [0, 0, 0, 1, 1, 1], [0], [0]>} : vector<2x16x16xbf16>, vector<2x16x16xbf16>, vector<2x16x16xf32> -> vector<2x16x16xf32>
    "tpu.trace_stop"() : () -> ()
    %194 = vector.broadcast %27 : f32 to vector<2x16x16xf32>
    %195 = arith.mulf %193, %194 : vector<2x16x16xf32>
    %196 = vector.shape_cast %25 : vector<16x16xf32> to vector<1x16x16xf32>
    %197 = vector.broadcast %196 : vector<1x16x16xf32> to vector<2x16x16xf32>
    %198 = arith.addf %195, %197 : vector<2x16x16xf32>
    %cst_78 = arith.constant dense<0xFF800000> : vector<2x16xf32>
    %199 = vector.multi_reduction <maximumf>, %198, %cst_78 [2] : vector<2x16x16xf32> to vector<2x16xf32>
    %200 = vector.shape_cast %199 : vector<2x16xf32> to vector<2x16x1xf32>
    %201 = vector.broadcast %200 : vector<2x16x1xf32> to vector<2x16x16xf32>
    %202 = arith.subf %198, %201 : vector<2x16x16xf32>
    %203 = math.exp %202 : vector<2x16x16xf32>
    %cst_79 = arith.constant dense<0.000000e+00> : vector<2x16xf32>
    %204 = vector.multi_reduction <add>, %203, %cst_79 [2] : vector<2x16x16xf32> to vector<2x16xf32>
    %205 = vector.shape_cast %204 : vector<2x16xf32> to vector<2x16x1xf32>
    %206 = tpu.reciprocal %205 {approx = true} : vector<2x16x1xf32> -> vector<2x16x1xf32>
    %207 = vector.broadcast %206 : vector<2x16x1xf32> to vector<2x16x16xf32>
    %208 = arith.mulf %203, %207 : vector<2x16x16xf32>
    %209 = arith.truncf %208 : vector<2x16x16xf32> to vector<2x16x16xbf16>
    %210 = arith.truncf %190 : vector<2x16x16xf32> to vector<2x16x16xbf16>
    "tpu.trace_start"() <{level = 10 : i32, message = "nqk,nkd->nqd"}> : () -> ()
    %cst_80 = arith.constant dense<0.000000e+00> : vector<2x16x16xf32>
    %211 = tpu.matmul %209, %210, %cst_80 {dimension_numbers = #tpu.dot_dimension_numbers<[2], [1], [1], [2], [0, 0, 0, 1, 1, 2], [0], [0]>} : vector<2x16x16xbf16>, vector<2x16x16xbf16>, vector<2x16x16xf32> -> vector<2x16x16xf32>
    "tpu.trace_stop"() : () -> ()
    %212 = vector.extract_strided_slice %211 {offsets = [0, 0, 0], sizes = [1, 16, 16], strides = [1, 1, 1]} : vector<2x16x16xf32> to vector<1x16x16xf32>
    %213 = vector.shape_cast %212 : vector<1x16x16xf32> to vector<16x16xf32>
    %214 = vector.extract_strided_slice %211 {offsets = [1, 0, 0], sizes = [1, 16, 16], strides = [1, 1, 1]} : vector<2x16x16xf32> to vector<1x16x16xf32>
    %215 = vector.shape_cast %214 : vector<1x16x16xf32> to vector<16x16xf32>
    %216 = tpu.concatenate %213, %215 in 1 : vector<16x16xf32>, vector<16x16xf32> -> vector<16x32xf32>
    %217 = arith.truncf %216 : vector<16x32xf32> to vector<16x32xbf16>
    %c1_81 = arith.constant 1 : index
    %c0_82 = arith.constant 0 : index
    %c0_83 = arith.constant 0 : index
    %218 = vector.load %arg6[%c1_81, %c0_82, %c0_83] : memref<2x32x32xbf16, #tpu.memory_space<vmem>>, vector<1x32x32xbf16>
    %219 = vector.shape_cast %218 : vector<1x32x32xbf16> to vector<32x32xbf16>
    %cst_84 = arith.constant dense<0.000000e+00> : vector<16x32xf32>
    %220 = tpu.matmul %217, %219, %cst_84 {dimension_numbers = #tpu.dot_dimension_numbers<[1], [0], [0], [1], [0, 0, 1, 1], [], []>} : vector<16x32xbf16>, vector<32x32xbf16>, vector<16x32xf32> -> vector<16x32xf32>
    %c1_85 = arith.constant 1 : index
    %c0_86 = arith.constant 0 : index
    %c0_87 = arith.constant 0 : index
    %221 = vector.load %arg7[%c1_85, %c0_86, %c0_87] : memref<2x1x32xf32, #tpu.memory_space<vmem>>, vector<1x1x32xf32>
    %222 = vector.shape_cast %221 : vector<1x1x32xf32> to vector<1x32xf32>
    %223 = vector.broadcast %222 : vector<1x32xf32> to vector<16x32xf32>
    %224 = arith.addf %220, %223 : vector<16x32xf32>
    %225 = arith.addf %167, %224 : vector<16x32xf32>
    %c1_88 = arith.constant 1 : index
    %c0_89 = arith.constant 0 : index
    %c0_90 = arith.constant 0 : index
    %226 = vector.load %arg8[%c1_88, %c0_89, %c0_90] : memref<2x1x32xf32, #tpu.memory_space<vmem>>, vector<1x1x32xf32>
    %227 = vector.shape_cast %226 : vector<1x1x32xf32> to vector<1x32xf32>
    %c1_91 = arith.constant 1 : index
    %c0_92 = arith.constant 0 : index
    %c0_93 = arith.constant 0 : index
    %228 = vector.load %arg9[%c1_91, %c0_92, %c0_93] : memref<2x1x32xf32, #tpu.memory_space<vmem>>, vector<1x1x32xf32>
    %229 = vector.shape_cast %228 : vector<1x1x32xf32> to vector<1x32xf32>
    %cst_94 = arith.constant dense<0.000000e+00> : vector<16xf32>
    %230 = vector.multi_reduction <add>, %225, %cst_94 [1] : vector<16x32xf32> to vector<16xf32>
    %231 = vector.shape_cast %230 : vector<16xf32> to vector<16x1xf32>
    %cst_95 = arith.constant 3.200000e+01 : f32
    %232 = vector.broadcast %cst_95 : f32 to vector<16x1xf32>
    %233 = arith.divf %231, %232 : vector<16x1xf32>
    %234 = vector.broadcast %233 : vector<16x1xf32> to vector<16x32xf32>
    %235 = arith.subf %225, %234 : vector<16x32xf32>
    %236 = arith.mulf %235, %235 : vector<16x32xf32>
    %cst_96 = arith.constant dense<0.000000e+00> : vector<16xf32>
    %237 = vector.multi_reduction <add>, %236, %cst_96 [1] : vector<16x32xf32> to vector<16xf32>
    %238 = vector.shape_cast %237 : vector<16xf32> to vector<16x1xf32>
    %cst_97 = arith.constant 3.200000e+01 : f32
    %239 = vector.broadcast %cst_97 : f32 to vector<16x1xf32>
    %240 = arith.divf %238, %239 : vector<16x1xf32>
    %cst_98 = arith.constant 9.99999996E-13 : f32
    %241 = vector.broadcast %cst_98 : f32 to vector<16x1xf32>
    %242 = arith.addf %240, %241 : vector<16x1xf32>
    %243 = math.rsqrt %242 : vector<16x1xf32>
    %244 = vector.broadcast %233 : vector<16x1xf32> to vector<16x32xf32>
    %245 = arith.subf %225, %244 : vector<16x32xf32>
    %246 = vector.broadcast %243 : vector<16x1xf32> to vector<16x32xf32>
    %247 = arith.mulf %245, %246 : vector<16x32xf32>
    %248 = vector.broadcast %227 : vector<1x32xf32> to vector<16x32xf32>
    %249 = arith.mulf %247, %248 : vector<16x32xf32>
    %250 = vector.broadcast %229 : vector<1x32xf32> to vector<16x32xf32>
    %251 = arith.addf %249, %250 : vector<16x32xf32>
    %252 = arith.truncf %251 : vector<16x32xf32> to vector<16x32xbf16>
    %c1_99 = arith.constant 1 : index
    %c0_100 = arith.constant 0 : index
    %c0_101 = arith.constant 0 : index
    %253 = vector.load %arg10[%c1_99, %c0_100, %c0_101] : memref<2x32x128xbf16, #tpu.memory_space<vmem>>, vector<1x32x128xbf16>
    %254 = vector.shape_cast %253 : vector<1x32x128xbf16> to vector<32x128xbf16>
    %cst_102 = arith.constant dense<0.000000e+00> : vector<16x128xf32>
    %255 = tpu.matmul %252, %254, %cst_102 {dimension_numbers = #tpu.dot_dimension_numbers<[1], [0], [0], [1], [0, 0, 1, 1], [], []>} : vector<16x32xbf16>, vector<32x128xbf16>, vector<16x128xf32> -> vector<16x128xf32>
    %c1_103 = arith.constant 1 : index
    %c0_104 = arith.constant 0 : index
    %c0_105 = arith.constant 0 : index
    %256 = vector.load %arg11[%c1_103, %c0_104, %c0_105] : memref<2x1x128xf32, #tpu.memory_space<vmem>>, vector<1x1x128xf32>
    %257 = vector.shape_cast %256 : vector<1x1x128xf32> to vector<1x128xf32>
    %258 = vector.broadcast %257 : vector<1x128xf32> to vector<16x128xf32>
    %259 = arith.addf %255, %258 : vector<16x128xf32>
    %260 = arith.mulf %259, %259 : vector<16x128xf32>
    %261 = arith.mulf %259, %260 : vector<16x128xf32>
    %cst_106 = arith.constant 4.471500e-02 : f32
    %262 = vector.broadcast %cst_106 : f32 to vector<16x128xf32>
    %263 = arith.mulf %262, %261 : vector<16x128xf32>
    %264 = arith.addf %259, %263 : vector<16x128xf32>
    %cst_107 = arith.constant 0.797884583 : f32
    %265 = vector.broadcast %cst_107 : f32 to vector<16x128xf32>
    %266 = arith.mulf %265, %264 : vector<16x128xf32>
    %267 = math.tanh %266 : vector<16x128xf32>
    %cst_108 = arith.constant 1.000000e+00 : f32
    %268 = vector.broadcast %cst_108 : f32 to vector<16x128xf32>
    %269 = arith.addf %268, %267 : vector<16x128xf32>
    %cst_109 = arith.constant 5.000000e-01 : f32
    %270 = vector.broadcast %cst_109 : f32 to vector<16x128xf32>
    %271 = arith.mulf %270, %269 : vector<16x128xf32>
    %272 = arith.mulf %259, %271 : vector<16x128xf32>
    %273 = arith.truncf %272 : vector<16x128xf32> to vector<16x128xbf16>
    %c1_110 = arith.constant 1 : index
    %c0_111 = arith.constant 0 : index
    %c0_112 = arith.constant 0 : index
    %274 = vector.load %arg12[%c1_110, %c0_111, %c0_112] : memref<2x128x32xbf16, #tpu.memory_space<vmem>>, vector<1x128x32xbf16>
    %275 = vector.shape_cast %274 : vector<1x128x32xbf16> to vector<128x32xbf16>
    %cst_113 = arith.constant dense<0.000000e+00> : vector<16x32xf32>
    %276 = tpu.matmul %273, %275, %cst_113 {dimension_numbers = #tpu.dot_dimension_numbers<[1], [0], [0], [1], [0, 0, 1, 1], [], []>} : vector<16x128xbf16>, vector<128x32xbf16>, vector<16x32xf32> -> vector<16x32xf32>
    %c1_114 = arith.constant 1 : index
    %c0_115 = arith.constant 0 : index
    %c0_116 = arith.constant 0 : index
    %277 = vector.load %arg13[%c1_114, %c0_115, %c0_116] : memref<2x1x32xf32, #tpu.memory_space<vmem>>, vector<1x1x32xf32>
    %278 = vector.shape_cast %277 : vector<1x1x32xf32> to vector<1x32xf32>
    %279 = vector.broadcast %278 : vector<1x32xf32> to vector<16x32xf32>
    %280 = arith.addf %276, %279 : vector<16x32xf32>
    %281 = arith.addf %251, %280 : vector<16x32xf32>
    %c1_117 = arith.constant 1 : index
    %c0_118 = arith.constant 0 : index
    %c0_119 = arith.constant 0 : index
    %282 = vector.load %arg14[%c1_117, %c0_118, %c0_119] : memref<2x1x32xf32, #tpu.memory_space<vmem>>, vector<1x1x32xf32>
    %283 = vector.shape_cast %282 : vector<1x1x32xf32> to vector<1x32xf32>
    %c1_120 = arith.constant 1 : index
    %c0_121 = arith.constant 0 : index
    %c0_122 = arith.constant 0 : index
    %284 = vector.load %arg15[%c1_120, %c0_121, %c0_122] : memref<2x1x32xf32, #tpu.memory_space<vmem>>, vector<1x1x32xf32>
    %285 = vector.shape_cast %284 : vector<1x1x32xf32> to vector<1x32xf32>
    %cst_123 = arith.constant dense<0.000000e+00> : vector<16xf32>
    %286 = vector.multi_reduction <add>, %281, %cst_123 [1] : vector<16x32xf32> to vector<16xf32>
    %287 = vector.shape_cast %286 : vector<16xf32> to vector<16x1xf32>
    %cst_124 = arith.constant 3.200000e+01 : f32
    %288 = vector.broadcast %cst_124 : f32 to vector<16x1xf32>
    %289 = arith.divf %287, %288 : vector<16x1xf32>
    %290 = vector.broadcast %289 : vector<16x1xf32> to vector<16x32xf32>
    %291 = arith.subf %281, %290 : vector<16x32xf32>
    %292 = arith.mulf %291, %291 : vector<16x32xf32>
    %cst_125 = arith.constant dense<0.000000e+00> : vector<16xf32>
    %293 = vector.multi_reduction <add>, %292, %cst_125 [1] : vector<16x32xf32> to vector<16xf32>
    %294 = vector.shape_cast %293 : vector<16xf32> to vector<16x1xf32>
    %cst_126 = arith.constant 3.200000e+01 : f32
    %295 = vector.broadcast %cst_126 : f32 to vector<16x1xf32>
    %296 = arith.divf %294, %295 : vector<16x1xf32>
    %cst_127 = arith.constant 9.99999996E-13 : f32
    %297 = vector.broadcast %cst_127 : f32 to vector<16x1xf32>
    %298 = arith.addf %296, %297 : vector<16x1xf32>
    %299 = math.rsqrt %298 : vector<16x1xf32>
    %300 = vector.broadcast %289 : vector<16x1xf32> to vector<16x32xf32>
    %301 = arith.subf %281, %300 : vector<16x32xf32>
    %302 = vector.broadcast %299 : vector<16x1xf32> to vector<16x32xf32>
    %303 = arith.mulf %301, %302 : vector<16x32xf32>
    %304 = vector.broadcast %283 : vector<1x32xf32> to vector<16x32xf32>
    %305 = arith.mulf %303, %304 : vector<16x32xf32>
    %306 = vector.broadcast %285 : vector<1x32xf32> to vector<16x32xf32>
    %307 = arith.addf %305, %306 : vector<16x32xf32>
    %308 = arith.truncf %307 : vector<16x32xf32> to vector<16x32xbf16>
    %c0_128 = arith.constant 0 : index
    %c0_129 = arith.constant 0 : index
    %309 = vector.load %arg16[%c0_128, %c0_129] : memref<32x32xbf16, #tpu.memory_space<vmem>>, vector<32x32xbf16>
    %cst_130 = arith.constant dense<0.000000e+00> : vector<16x32xf32>
    %310 = tpu.matmul %308, %309, %cst_130 {dimension_numbers = #tpu.dot_dimension_numbers<[1], [0], [0], [1], [0, 0, 1, 1], [], []>} : vector<16x32xbf16>, vector<32x32xbf16>, vector<16x32xf32> -> vector<16x32xf32>
    %c0_131 = arith.constant 0 : index
    %c0_132 = arith.constant 0 : index
    %311 = vector.load %arg17[%c0_131, %c0_132] : memref<1x32xf32, #tpu.memory_space<vmem>>, vector<1x32xf32>
    %312 = vector.broadcast %311 : vector<1x32xf32> to vector<16x32xf32>
    %313 = arith.addf %310, %312 : vector<16x32xf32>
    %314 = math.tanh %313 : vector<16x32xf32>
    %315 = arith.truncf %314 : vector<16x32xf32> to vector<16x32xbf16>
    %c0_133 = arith.constant 0 : index
    %c0_134 = arith.constant 0 : index
    %316 = vector.load %arg18[%c0_133, %c0_134] : memref<32x128xbf16, #tpu.memory_space<vmem>>, vector<32x128xbf16>
    %cst_135 = arith.constant dense<0.000000e+00> : vector<16x128xf32>
    %317 = tpu.matmul %315, %316, %cst_135 {dimension_numbers = #tpu.dot_dimension_numbers<[1], [0], [0], [1], [0, 0, 1, 1], [], []>} : vector<16x32xbf16>, vector<32x128xbf16>, vector<16x128xf32> -> vector<16x128xf32>
    %c0_136 = arith.constant 0 : index
    %c0_137 = arith.constant 0 : index
    %318 = vector.load %arg19[%c0_136, %c0_137] : memref<1x128xf32, #tpu.memory_space<vmem>>, vector<1x128xf32>
    %319 = vector.broadcast %318 : vector<1x128xf32> to vector<16x128xf32>
    %320 = arith.addf %317, %319 : vector<16x128xf32>
    %c0_138 = arith.constant 0 : index
    %c0_139 = arith.constant 0 : index
    %321 = vector.load %arg20[%c0_138, %c0_139] : memref<16x128xf32, #tpu.memory_space<vmem>>, vector<16x128xf32>
    tpu.vector_store %arg20[%c0_138, %c0_139], %320 {strides = array<i32>} : memref<16x128xf32, #tpu.memory_space<vmem>>, vector<16x128xf32>,
    return
  }
}

</mosaic_0001>

<llo_original>
// kernel: forward.1
$region0: #{forward.1}
  #allocation0 [shape = 'u32[]', space=smem, size = 0x4, offset = 0x4, fixed_abs, tag = 'smem constant byte address 0x4 - core index']
  #allocation1 [shape = 'u32[72,128]{1,0:T(1,128)}', space=vmem, size = 0x9000, scoped, tag = 'internal scratch']
  %s0 = inlined_call_operand.vmem [shape: f32[16,32], index: 0, kind: input, shape index: {}]
  %s1 = inlined_call_operand.vmem [shape: f32[16,16], index: 1, kind: input, shape index: {}]
  %s2 = inlined_call_operand.vmem [shape: f32[1,32], index: 2, kind: input, shape index: {}]
  %s3 = inlined_call_operand.vmem [shape: f32[1,32], index: 3, kind: input, shape index: {}]
  %s4 = inlined_call_operand.vmem [shape: bf16[2,32,96], index: 4, kind: input, shape index: {}]
  %s5 = inlined_call_operand.vmem [shape: f32[2,1,96], index: 5, kind: input, shape index: {}]
  %s6 = inlined_call_operand.vmem [shape: bf16[2,32,32], index: 6, kind: input, shape index: {}]
  %s7 = inlined_call_operand.vmem [shape: f32[2,1,32], index: 7, kind: input, shape index: {}]
  %s8 = inlined_call_operand.vmem [shape: f32[2,1,32], index: 8, kind: input, shape index: {}]
  %s9 = inlined_call_operand.vmem [shape: f32[2,1,32], index: 9, kind: input, shape index: {}]
  %s10 = inlined_call_operand.vmem [shape: bf16[2,32,128], index: 10, kind: input, shape index: {}]
  %s11 = inlined_call_operand.vmem [shape: f32[2,1,128], index: 11, kind: input, shape index: {}]
  %s12 = inlined_call_operand.vmem [shape: bf16[2,128,32], index: 12, kind: input, shape index: {}]
  %s13 = inlined_call_operand.vmem [shape: f32[2,1,32], index: 13, kind: input, shape index: {}]
  %s14 = inlined_call_operand.vmem [shape: f32[2,1,32], index: 14, kind: input, shape index: {}]
  %s15 = inlined_call_operand.vmem [shape: f32[2,1,32], index: 15, kind: input, shape index: {}]
  %s16 = inlined_call_operand.vmem [shape: bf16[32,32], index: 16, kind: input, shape index: {}]
  %s17 = inlined_call_operand.vmem [shape: f32[1,32], index: 17, kind: input, shape index: {}]
  %s18 = inlined_call_operand.vmem [shape: bf16[32,128], index: 18, kind: input, shape index: {}]
  %s19 = inlined_call_operand.vmem [shape: f32[1,128], index: 19, kind: input, shape index: {}]
  %s20 = inlined_call_operand.vmem [shape: f32[16,128], index: 20, kind: output, shape index: {}]
  %s21 = sld [smem:[#allocation0]]
  $region90: #{forward.1} parent=0
    _
  %s23 = ssub.s32 1, %s21
  %s24 = scalar_select 0, %s23, %s21
  // Predicated region
  $region2: #{forward.1} parent=0 // pred_check
    _
  $region3: #{forward.1} parent=0 // pred_check_branch
    %26 = sbr.rel (0) target = $region5
  $region4: #{forward.1} parent=0 // pred_region
    _
  $region5: #{forward.1} parent=0 // pred_fallthru
    _
  // Predicated region
  $region6: #{forward.1} parent=0 // pred_check
    _
  $region7: #{forward.1} parent=0 // pred_check_branch
    %28 = sbr.rel (0) target = $region9
  $region8: #{forward.1} parent=0 // pred_region
    _
  $region9: #{forward.1} parent=0 // pred_fallthru
    _
  // Predicated region
  $region10: #{forward.1} parent=0 // pred_check
    _
  $region11: #{forward.1} parent=0 // pred_check_branch
    %30 = sbr.rel (0) target = $region13
  $region12: #{forward.1} parent=0 // pred_region
    _
  $region13: #{forward.1} parent=0 // pred_fallthru
    _
  // Predicated region
  $region14: #{forward.1} parent=0 // pred_check
    _
  $region15: #{forward.1} parent=0 // pred_check_branch
    %32 = sbr.rel (0) target = $region17
  $region16: #{forward.1} parent=0 // pred_region
    _
  $region17: #{forward.1} parent=0 // pred_fallthru
    _
  // Predicated region
  $region18: #{forward.1} parent=0 // pred_check
    _
  $region19: #{forward.1} parent=0 // pred_check_branch
    %34 = sbr.rel (0) target = $region21
  $region20: #{forward.1} parent=0 // pred_region
    _
  $region21: #{forward.1} parent=0 // pred_fallthru
    _
  // Predicated region
  $region22: #{forward.1} parent=0 // pred_check
    _
  $region23: #{forward.1} parent=0 // pred_check_branch
    %36 = sbr.rel (0) target = $region25
  $region24: #{forward.1} parent=0 // pred_region
    _
  $region25: #{forward.1} parent=0 // pred_fallthru
    _
  // Predicated region
  $region26: #{forward.1} parent=0 // pred_check
    _
  $region27: #{forward.1} parent=0 // pred_check_branch
    %38 = sbr.rel (0) target = $region29
  $region28: #{forward.1} parent=0 // pred_region
    _
  $region29: #{forward.1} parent=0 // pred_fallthru
    _
  // Predicated region
  $region30: #{forward.1} parent=0 // pred_check
    _
  $region31: #{forward.1} parent=0 // pred_check_branch
    %40 = sbr.rel (0) target = $region33
  $region32: #{forward.1} parent=0 // pred_region
    _
  $region33: #{forward.1} parent=0 // pred_fallthru
    _
  // Predicated region
  $region34: #{forward.1} parent=0 // pred_check
    _
  $region35: #{forward.1} parent=0 // pred_check_branch
    %42 = sbr.rel (0) target = $region37
  $region36: #{forward.1} parent=0 // pred_region
    _
  $region37: #{forward.1} parent=0 // pred_fallthru
    _
  // Predicated region
  $region38: #{forward.1} parent=0 // pred_check
    _
  $region39: #{forward.1} parent=0 // pred_check_branch
    %44 = sbr.rel (0) target = $region41
  $region40: #{forward.1} parent=0 // pred_region
    _
  $region41: #{forward.1} parent=0 // pred_fallthru
    _
  // Predicated region
  $region42: #{forward.1} parent=0 // pred_check
    _
  $region43: #{forward.1} parent=0 // pred_check_branch
    %46 = sbr.rel (0) target = $region45
  $region44: #{forward.1} parent=0 // pred_region
    _
  $region45: #{forward.1} parent=0 // pred_fallthru
    _
  // Predicated region
  $region46: #{forward.1} parent=0 // pred_check
    _
  $region47: #{forward.1} parent=0 // pred_check_branch
    %48 = sbr.rel (0) target = $region49
  $region48: #{forward.1} parent=0 // pred_region
    _
  $region49: #{forward.1} parent=0 // pred_fallthru
    _
  // Predicated region
  $region50: #{forward.1} parent=0 // pred_check
    _
  $region51: #{forward.1} parent=0 // pred_check_branch
    %50 = sbr.rel (0) target = $region53
  $region52: #{forward.1} parent=0 // pred_region
    _
  $region53: #{forward.1} parent=0 // pred_fallthru
    _
  // Predicated region
  $region54: #{forward.1} parent=0 // pred_check
    _
  $region55: #{forward.1} parent=0 // pred_check_branch
    %52 = sbr.rel (0) target = $region57
  $region56: #{forward.1} parent=0 // pred_region
    _
  $region57: #{forward.1} parent=0 // pred_fallthru
    _
  // Predicated region
  $region58: #{forward.1} parent=0 // pred_check
    _
  $region59: #{forward.1} parent=0 // pred_check_branch
    %54 = sbr.rel (0) target = $region61
  $region60: #{forward.1} parent=0 // pred_region
    _
  $region61: #{forward.1} parent=0 // pred_fallthru
    _
  // Predicated region
  $region62: #{forward.1} parent=0 // pred_check
    _
  $region63: #{forward.1} parent=0 // pred_check_branch
    %56 = sbr.rel (0) target = $region65
  $region64: #{forward.1} parent=0 // pred_region
    _
  $region65: #{forward.1} parent=0 // pred_fallthru
    _
  // Predicated region
  $region66: #{forward.1} parent=0 // pred_check
    _
  $region67: #{forward.1} parent=0 // pred_check_branch
    %58 = sbr.rel (0) target = $region69
  $region68: #{forward.1} parent=0 // pred_region
    _
  $region69: #{forward.1} parent=0 // pred_fallthru
    _
  // Predicated region
  $region70: #{forward.1} parent=0 // pred_check
    _
  $region71: #{forward.1} parent=0 // pred_check_branch
    %60 = sbr.rel (0) target = $region73
  $region72: #{forward.1} parent=0 // pred_region
    _
  $region73: #{forward.1} parent=0 // pred_fallthru
    _
  // Predicated region
  $region74: #{forward.1} parent=0 // pred_check
    _
  $region75: #{forward.1} parent=0 // pred_check_branch
    %62 = sbr.rel (0) target = $region77
  $region76: #{forward.1} parent=0 // pred_region
    _
  $region77: #{forward.1} parent=0 // pred_fallthru
    _
  // Predicated region
  $region78: #{forward.1} parent=0 // pred_check
    _
  $region79: #{forward.1} parent=0 // pred_check_branch
    %64 = sbr.rel (0) target = $region81
  $region80: #{forward.1} parent=0 // pred_region
    _
  $region81: #{forward.1} parent=0 // pred_fallthru
    _
  %v66 = vld [vmem:[%s0] sm:$0xff]
  %v67 = vld [vmem:[%s0 + $0x8] sm:$0xff]
  %v68 = vld [vmem:[%s2] sm:$0x1]
  %v69 = vld [vmem:[%s3] sm:$0x1]
  %vm70 = vcmask 261120
  %v71 = vsel %vm70, %v66, 0.0
  %72 = vadd.xlane.f32.xlu0 %v71
  %v73 = vpop.xlane.xlu0 %72
  %v74 = vsel %vm70, %v67, 0.0
  %75 = vadd.xlane.f32.xlu0 %v74
  %v76 = vpop.xlane.xlu0 %75
  %v77 = vrcp.pop 32.0
  %v78 = vmul.f32 32.0, %v77
  %v79 = vsub.f32 1.0, %v78
  %v80 = vmul.f32 %v77, %v79
  %v81 = vadd.f32 %v77, %v80
  %vm82 = vweird.f32 %v77
  %v83 = vsel %vm82, %v77, %v81
  %v84 = vmul.f32 %v73, %v83
  %v85 = vmul.f32 %v76, %v83
  %v86 = vsub.f32 %v66, %v84
  %v87 = vsub.f32 %v67, %v85
  %v88 = vmul.f32 %v86, %v86
  %v89 = vmul.f32 %v87, %v87
  %v90 = vsel %vm70, %v88, 0.0
  %91 = vadd.xlane.f32.xlu0 %v90
  %v92 = vpop.xlane.xlu0 %91
  %v93 = vsel %vm70, %v89, 0.0
  %94 = vadd.xlane.f32.xlu0 %v93
  %v95 = vpop.xlane.xlu0 %94
  %v96 = vmul.f32 %v92, %v83
  %v97 = vmul.f32 %v95, %v83
  %v98 = vadd.f32 %v96, 1e-12
  %v99 = vadd.f32 %v97, 1e-12
  %v100 = vrsqrt.pop %v98
  %v101 = vmul.f32 %v100, %v98
  %v102 = vmul.f32 %v101, %v100
  %v103 = vmul.f32 0.5, %v102
  %v104 = vsub.f32 1.5, %v103
  %v105 = vmul.f32 %v100, %v104
  %vm106 = vweird.f32 %v98
  %vm107 = vweird.f32 %v100
  %vm108 = vmor %vm106, %vm107
  %v109 = vsel %vm108, %v100, %v105
  %v110 = vrsqrt.pop %v99
  %v111 = vmul.f32 %v110, %v99
  %v112 = vmul.f32 %v111, %v110
  %v113 = vmul.f32 0.5, %v112
  %v114 = vsub.f32 1.5, %v113
  %v115 = vmul.f32 %v110, %v114
  %vm116 = vweird.f32 %v99
  %vm117 = vweird.f32 %v110
  %vm118 = vmor %vm116, %vm117
  %v119 = vsel %vm118, %v110, %v115
  %v120 = vmul.f32 %v86, %v109
  %v121 = vmul.f32 %v87, %v119
  %v123 = vperm.slane %v68, 0
  %v125 = vmul.f32 %v120, %v123
  %v126 = vmul.f32 %v121, %v123
  %v128 = vperm.slane %v69, 0
  %v130 = vadd.f32 %v125, %v128
  %v131 = vadd.f32 %v126, %v128
  %v132 = vld [vmem:[%s1] sm:$0xff]
  %v133 = vld [vmem:[%s1 + $0x8] sm:$0xff]
  %v134 = vpack.c.bf16 %v131, %v130
  %v135 = vld [vmem:[%s4] sm:$0xf]
  %v136 = vld [vmem:[%s4 + $0x4] sm:$0xf]
  %v137 = vld [vmem:[%s4 + $0x8] sm:$0xf]
  %v138 = vld [vmem:[%s4 + $0xc] sm:$0xf]
  %v139 = vld [vmem:[%s5] sm:$0x1]
  %v141 = vperm.slane %v139, 0
  %v147 = vunpack.c.l.b16 %v135
  %v148 = vunpack.c.l.b16 %v136
  %v149 = vunpack.c.l.b16 %v137
  %v150 = vunpack.c.l.b16 %v138
  %v151 = vpack.c.b16 %v148, %v147
  %v152 = vpack.c.b16 %v150, %v149
  %v156 = vsel %vm70, %v134, 0
  %158 = vmatpush.bf16.msra.mxu0 0
  %159 = vmatpush.bf16.msra.mxu0 0
  %160 = vmatpush.bf16.msra.mxu0 0
  %161 = vmatpush.bf16.msra.mxu0 0
  %162 = vmatpush.bf16.msra.mxu0 0
  %163 = vmatpush.bf16.msra.mxu0 0
  %164 = vmatpush.bf16.msra.mxu0 %v152
  %165 = vmatpush.bf16.msra.mxu0 %v151
  %166 = vmatmul.bf16.gmra.mxu0 %v156
  %v167 = vpop.f32.mrf.mxu0
  %v168 = vadd.f32 %v141, %v167
  %v169 = vpop.f32.mrf.mxu0
  %v170 = vadd.f32 %v141, %v169
  %171 = vdwg.mxu0
  %174 = vrot.lane.b32.xlu0 %v168, 112
  %v175 = vpop.permute.xlu0 %174
  %176 = vrot.lane.b32.xlu0 %v170, 112
  %v177 = vpop.permute.xlu0 %176
  %v180 = vpack.c.bf16 %v168, %v168
  %v181 = vpack.c.bf16 %v170, %v170
  %v182 = vpack.c.bf16 %v175, %v175
  %v183 = vpack.c.bf16 %v177, %v177
  %v186 = vunpack.c.l.b16 %v180
  %v187 = vunpack.c.l.b16 %v181
  %v188 = vpack.c.b16 %v187, %v186
  %189 = vrot.lane.b32.xlu0 %v188, 96
  %v190 = vpop.permute.xlu0 %189
  %vm191 = vcmask 130048
  %v193 = vsel %vm191, %v188, 0
  %v196 = vsel %vm191, %v190, 0
  %198 = vmatpush.bf16.xpose.msra.mxu0 0
  %199 = vmatpush.bf16.xpose.msra.mxu0 0
  %200 = vmatpush.bf16.xpose.msra.mxu0 0
  %201 = vmatpush.bf16.xpose.msra.mxu0 0
  %202 = vmatpush.bf16.xpose.msra.mxu0 0
  %203 = vmatpush.bf16.xpose.msra.mxu0 0
  %204 = vmatpush.bf16.xpose.msra.mxu0 0
  %205 = vmatpush.bf16.xpose.msra.mxu0 %v196
  %206 = vmatmul.bf16.gmra.mxu0 %v193
  %v207 = vpop.f32.mrf.mxu0
  %v208 = vadd.f32 0.0, %v207
  %v209 = vpop.f32.mrf.mxu0
  %v210 = vadd.f32 0.0, %v209
  %211 = vdwg.mxu0
  %v214 = vunpack.c.l.b16 %v182
  %v215 = vunpack.c.l.b16 %v183
  %v216 = vpack.c.b16 %v215, %v214
  %217 = vrot.lane.b32.xlu0 %v216, 96
  %v218 = vpop.permute.xlu0 %217
  %v220 = vsel %vm191, %v216, 0
  %v223 = vsel %vm191, %v218, 0
  %225 = vmatpush.bf16.xpose.msra.mxu0 0
  %226 = vmatpush.bf16.xpose.msra.mxu0 0
  %227 = vmatpush.bf16.xpose.msra.mxu0 0
  %228 = vmatpush.bf16.xpose.msra.mxu0 0
  %229 = vmatpush.bf16.xpose.msra.mxu0 0
  %230 = vmatpush.bf16.xpose.msra.mxu0 0
  %231 = vmatpush.bf16.xpose.msra.mxu0 0
  %232 = vmatpush.bf16.xpose.msra.mxu0 %v223
  %233 = vmatmul.bf16.gmra.mxu0 %v220
  %v234 = vpop.f32.mrf.mxu0
  %v235 = vadd.f32 0.0, %v234
  %v236 = vpop.f32.mrf.mxu0
  %v237 = vadd.f32 0.0, %v236
  %238 = vdwg.mxu0
  %v239 = vmul.f32 %v208, 0.25
  %v240 = vmul.f32 %v210, 0.25
  %v241 = vmul.f32 %v235, 0.25
  %v242 = vmul.f32 %v237, 0.25
  %v243 = vadd.f32 %v239, %v132
  %v244 = vadd.f32 %v240, %v133
  %v245 = vadd.f32 %v241, %v132
  %v246 = vadd.f32 %v242, %v133
  %v247 = vsel %vm191, %v243, -inf
  %248 = vmax.xlane.f32.xlu0 %v247
  %v249 = vpop.xlane.xlu0 %248
  %v250 = vsel %vm191, %v244, -inf
  %251 = vmax.xlane.f32.xlu0 %v250
  %v252 = vpop.xlane.xlu0 %251
  %v253 = vsel %vm191, %v245, -inf
  %254 = vmax.xlane.f32.xlu0 %v253
  %v255 = vpop.xlane.xlu0 %254
  %v256 = vsel %vm191, %v246, -inf
  %257 = vmax.xlane.f32.xlu0 %v256
  %v258 = vpop.xlane.xlu0 %257
  %v259 = vsub.f32 %v243, %v249
  %v260 = vsub.f32 %v244, %v252
  %v261 = vsub.f32 %v245, %v255
  %v262 = vsub.f32 %v246, %v258
  %v263 = vmul.f32 %v259, 1.442695
  %v264 = vpow.pop %v263
  %v265 = vmul.f32 %v260, 1.442695
  %v266 = vpow.pop %v265
  %v267 = vmul.f32 %v261, 1.442695
  %v268 = vpow.pop %v267
  %v269 = vmul.f32 %v262, 1.442695
  %v270 = vpow.pop %v269
  %v271 = vsel %vm191, %v264, 0.0
  %272 = vadd.xlane.f32.xlu0 %v271
  %v273 = vpop.xlane.xlu0 %272
  %v274 = vsel %vm191, %v266, 0.0
  %275 = vadd.xlane.f32.xlu0 %v274
  %v276 = vpop.xlane.xlu0 %275
  %v277 = vsel %vm191, %v268, 0.0
  %278 = vadd.xlane.f32.xlu0 %v277
  %v279 = vpop.xlane.xlu0 %278
  %v280 = vsel %vm191, %v270, 0.0
  %281 = vadd.xlane.f32.xlu0 %v280
  %v282 = vpop.xlane.xlu0 %281
  %v283 = vrcp.pop %v273
  %v284 = vrcp.pop %v276
  %v285 = vrcp.pop %v279
  %v286 = vrcp.pop %v282
  %v287 = vmul.f32 %v264, %v283
  %v288 = vmul.f32 %v266, %v284
  %v289 = vmul.f32 %v268, %v285
  %v290 = vmul.f32 %v270, %v286
  %v291 = vpack.c.bf16 %v287, %v287
  %v292 = vpack.c.bf16 %v288, %v288
  %v293 = vpack.c.bf16 %v289, %v289
  %v294 = vpack.c.bf16 %v290, %v290
  %v297 = vunpack.c.l.b16 %v291
  %v298 = vunpack.c.l.b16 %v292
  %v299 = vpack.c.b16 %v298, %v297
  %300 = vrot.lane.b32.xlu0 %v188, 64
  %v301 = vpop.permute.xlu0 %300
  %v304 = vsel %vm191, %v299, 0
  %306 = vmatpush.bf16.msra.mxu0 0
  %307 = vmatpush.bf16.msra.mxu0 0
  %308 = vmatpush.bf16.msra.mxu0 0
  %309 = vmatpush.bf16.msra.mxu0 0
  %310 = vmatpush.bf16.msra.mxu0 0
  %311 = vmatpush.bf16.msra.mxu0 0
  %312 = vmatpush.bf16.msra.mxu0 0
  %313 = vmatpush.bf16.msra.mxu0 %v301
  %314 = vmatmul.bf16.gmra.mxu0 %v304
  %v315 = vpop.f32.mrf.mxu0
  %v316 = vadd.f32 0.0, %v315
  %v317 = vpop.f32.mrf.mxu0
  %v318 = vadd.f32 0.0, %v317
  %319 = vdwg.mxu0
  %v322 = vunpack.c.l.b16 %v293
  %v323 = vunpack.c.l.b16 %v294
  %v324 = vpack.c.b16 %v323, %v322
  %325 = vrot.lane.b32.xlu0 %v216, 64
  %v326 = vpop.permute.xlu0 %325
  %v329 = vsel %vm191, %v324, 0
  %331 = vmatpush.bf16.msra.mxu0 0
  %332 = vmatpush.bf16.msra.mxu0 0
  %333 = vmatpush.bf16.msra.mxu0 0
  %334 = vmatpush.bf16.msra.mxu0 0
  %335 = vmatpush.bf16.msra.mxu0 0
  %336 = vmatpush.bf16.msra.mxu0 0
  %337 = vmatpush.bf16.msra.mxu0 0
  %338 = vmatpush.bf16.msra.mxu0 %v326
  %339 = vmatmul.bf16.gmra.mxu0 %v329
  %v340 = vpop.f32.mrf.mxu0
  %v341 = vadd.f32 0.0, %v340
  %v342 = vpop.f32.mrf.mxu0
  %v343 = vadd.f32 0.0, %v342
  %344 = vdwg.mxu0
  %347 = vrot.lane.b32.xlu0 %v341, 16
  %v348 = vpop.permute.xlu0 %347
  %349 = vrot.lane.b32.xlu0 %v343, 16
  %v350 = vpop.permute.xlu0 %349
  %v353 = vsel %vm191, %v316, %v348
  %v354 = vsel %vm191, %v318, %v350
  %v355 = vpack.c.bf16 %v354, %v353
  %v356 = vld [vmem:[%s6] sm:$0xf]
  %v357 = vld [vmem:[%s6 + $0x4] sm:$0xf]
  %v358 = vld [vmem:[%s6 + $0x8] sm:$0xf]
  %v359 = vld [vmem:[%s6 + $0xc] sm:$0xf]
  %v360 = vld [vmem:[%s7] sm:$0x1]
  %v362 = vperm.slane %v360, 0
  %v368 = vunpack.c.l.b16 %v356
  %v369 = vunpack.c.l.b16 %v357
  %v370 = vunpack.c.l.b16 %v358
  %v371 = vunpack.c.l.b16 %v359
  %v372 = vpack.c.b16 %v369, %v368
  %v373 = vpack.c.b16 %v371, %v370
  %v377 = vsel %vm70, %v355, 0
  %379 = vmatpush.bf16.msra.mxu0 0
  %380 = vmatpush.bf16.msra.mxu0 0
  %381 = vmatpush.bf16.msra.mxu0 0
  %382 = vmatpush.bf16.msra.mxu0 0
  %383 = vmatpush.bf16.msra.mxu0 0
  %384 = vmatpush.bf16.msra.mxu0 0
  %385 = vmatpush.bf16.msra.mxu0 %v373
  %386 = vmatpush.bf16.msra.mxu0 %v372
  %387 = vmatmul.bf16.gmra.mxu0 %v377
  %v388 = vpop.f32.mrf.mxu0
  %v389 = vadd.f32 %v362, %v388
  %v390 = vpop.f32.mrf.mxu0
  %v391 = vadd.f32 %v362, %v390
  %392 = vdwg.mxu0
  %v393 = vadd.f32 %v130, %v389
  %v394 = vadd.f32 %v131, %v391
  %v395 = vld [vmem:[%s8] sm:$0x1]
  %v396 = vld [vmem:[%s9] sm:$0x1]
  %v397 = vsel %vm70, %v393, 0.0
  %398 = vadd.xlane.f32.xlu0 %v397
  %v399 = vpop.xlane.xlu0 %398
  %v400 = vsel %vm70, %v394, 0.0
  %401 = vadd.xlane.f32.xlu0 %v400
  %v402 = vpop.xlane.xlu0 %401
  %v403 = vmul.f32 %v399, %v83
  %v404 = vmul.f32 %v402, %v83
  %v405 = vsub.f32 %v393, %v403
  %v406 = vsub.f32 %v394, %v404
  %v407 = vmul.f32 %v405, %v405
  %v408 = vmul.f32 %v406, %v406
  %v409 = vsel %vm70, %v407, 0.0
  %410 = vadd.xlane.f32.xlu0 %v409
  %v411 = vpop.xlane.xlu0 %410
  %v412 = vsel %vm70, %v408, 0.0
  %413 = vadd.xlane.f32.xlu0 %v412
  %v414 = vpop.xlane.xlu0 %413
  %v415 = vmul.f32 %v411, %v83
  %v416 = vmul.f32 %v414, %v83
  %v417 = vadd.f32 %v415, 1e-12
  %v418 = vadd.f32 %v416, 1e-12
  %v419 = vrsqrt.pop %v417
  %v420 = vmul.f32 %v419, %v417
  %v421 = vmul.f32 %v420, %v419
  %v422 = vmul.f32 0.5, %v421
  %v423 = vsub.f32 1.5, %v422
  %v424 = vmul.f32 %v419, %v423
  %vm425 = vweird.f32 %v417
  %vm426 = vweird.f32 %v419
  %vm427 = vmor %vm425, %vm426
  %v428 = vsel %vm427, %v419, %v424
  %v429 = vrsqrt.pop %v418
  %v430 = vmul.f32 %v429, %v418
  %v431 = vmul.f32 %v430, %v429
  %v432 = vmul.f32 0.5, %v431
  %v433 = vsub.f32 1.5, %v432
  %v434 = vmul.f32 %v429, %v433
  %vm435 = vweird.f32 %v418
  %vm436 = vweird.f32 %v429
  %vm437 = vmor %vm435, %vm436
  %v438 = vsel %vm437, %v429, %v434
  %v439 = vmul.f32 %v405, %v428
  %v440 = vmul.f32 %v406, %v438
  %v442 = vperm.slane %v395, 0
  %v444 = vmul.f32 %v439, %v442
  %v445 = vmul.f32 %v440, %v442
  %v447 = vperm.slane %v396, 0
  %v449 = vadd.f32 %v444, %v447
  %v450 = vadd.f32 %v445, %v447
  %v451 = vpack.c.bf16 %v450, %v449
  %v452 = vld [vmem:[%s10] sm:$0xf]
  %v453 = vld [vmem:[%s10 + $0x4] sm:$0xf]
  %v454 = vld [vmem:[%s10 + $0x8] sm:$0xf]
  %v455 = vld [vmem:[%s10 + $0xc] sm:$0xf]
  %v456 = vld [vmem:[%s11] sm:$0x1]
  %v458 = vperm.slane %v456, 0
  %v464 = vunpack.c.l.b16 %v452
  %v465 = vunpack.c.l.b16 %v453
  %v466 = vunpack.c.l.b16 %v454
  %v467 = vunpack.c.l.b16 %v455
  %v468 = vpack.c.b16 %v465, %v464
  %v469 = vpack.c.b16 %v467, %v466
  %v473 = vsel %vm70, %v451, 0
  %475 = vmatpush.bf16.msra.mxu0 0
  %476 = vmatpush.bf16.msra.mxu0 0
  %477 = vmatpush.bf16.msra.mxu0 0
  %478 = vmatpush.bf16.msra.mxu0 0
  %479 = vmatpush.bf16.msra.mxu0 0
  %480 = vmatpush.bf16.msra.mxu0 0
  %481 = vmatpush.bf16.msra.mxu0 %v469
  %482 = vmatpush.bf16.msra.mxu0 %v468
  %483 = vmatmul.bf16.gmra.mxu0 %v473
  %v484 = vpop.f32.mrf.mxu0
  %v485 = vadd.f32 %v458, %v484
  %v486 = vpop.f32.mrf.mxu0
  %v487 = vadd.f32 %v458, %v486
  %488 = vdwg.mxu0
  %v489 = vmul.f32 %v485, %v485
  %v490 = vmul.f32 %v487, %v487
  %v491 = vmul.f32 %v485, %v489
  %v492 = vmul.f32 %v487, %v490
  %v493 = vmul.f32 %v491, 0.044715
  %v494 = vmul.f32 %v492, 0.044715
  %v495 = vadd.f32 %v485, %v493
  %v496 = vadd.f32 %v487, %v494
  %v497 = vmul.f32 %v495, 0.7978846
  %v498 = vmul.f32 %v496, 0.7978846
  %v499 = vtanh.pop %v497
  %v500 = vtanh.pop %v498
  %v501 = vadd.f32 %v499, 1.0
  %v502 = vadd.f32 %v500, 1.0
  %v503 = vmul.f32 %v501, 0.5
  %v504 = vmul.f32 %v502, 0.5
  %v505 = vmul.f32 %v485, %v503
  %v506 = vmul.f32 %v487, %v504
  %v507 = vpack.c.bf16 %v506, %v505
  %v508 = vld [vmem:[%s12] sm:$0xf]
  %v509 = vld [vmem:[%s12 + $0x4] sm:$0xf]
  %v510 = vld [vmem:[%s12 + $0x8] sm:$0xf]
  %v511 = vld [vmem:[%s12 + $0xc] sm:$0xf]
  %v512 = vld [vmem:[%s12 + $0x10] sm:$0xf]
  %v513 = vld [vmem:[%s12 + $0x14] sm:$0xf]
  %v514 = vld [vmem:[%s12 + $0x18] sm:$0xf]
  %v515 = vld [vmem:[%s12 + $0x1c] sm:$0xf]
  %v516 = vld [vmem:[%s12 + $0x20] sm:$0xf]
  %v517 = vld [vmem:[%s12 + $0x24] sm:$0xf]
  %v518 = vld [vmem:[%s12 + $0x28] sm:$0xf]
  %v519 = vld [vmem:[%s12 + $0x2c] sm:$0xf]
  %v520 = vld [vmem:[%s12 + $0x30] sm:$0xf]
  %v521 = vld [vmem:[%s12 + $0x34] sm:$0xf]
  %v522 = vld [vmem:[%s12 + $0x38] sm:$0xf]
  %v523 = vld [vmem:[%s12 + $0x3c] sm:$0xf]
  %v524 = vld [vmem:[%s13] sm:$0x1]
  %v526 = vperm.slane %v524, 0
  %v544 = vunpack.c.l.b16 %v508
  %v545 = vunpack.c.l.b16 %v509
  %v546 = vunpack.c.l.b16 %v510
  %v547 = vunpack.c.l.b16 %v511
  %v548 = vunpack.c.l.b16 %v512
  %v549 = vunpack.c.l.b16 %v513
  %v550 = vunpack.c.l.b16 %v514
  %v551 = vunpack.c.l.b16 %v515
  %v552 = vunpack.c.l.b16 %v516
  %v553 = vunpack.c.l.b16 %v517
  %v554 = vunpack.c.l.b16 %v518
  %v555 = vunpack.c.l.b16 %v519
  %v556 = vunpack.c.l.b16 %v520
  %v557 = vunpack.c.l.b16 %v521
  %v558 = vunpack.c.l.b16 %v522
  %v559 = vunpack.c.l.b16 %v523
  %v560 = vpack.c.b16 %v545, %v544
  %v561 = vpack.c.b16 %v547, %v546
  %v562 = vpack.c.b16 %v549, %v548
  %v563 = vpack.c.b16 %v551, %v550
  %v564 = vpack.c.b16 %v553, %v552
  %v565 = vpack.c.b16 %v555, %v554
  %v566 = vpack.c.b16 %v557, %v556
  %v567 = vpack.c.b16 %v559, %v558
  %576 = vmatpush.bf16.msra.mxu0 %v567
  %577 = vmatpush.bf16.msra.mxu0 %v566
  %578 = vmatpush.bf16.msra.mxu0 %v565
  %579 = vmatpush.bf16.msra.mxu0 %v564
  %580 = vmatpush.bf16.msra.mxu0 %v563
  %581 = vmatpush.bf16.msra.mxu0 %v562
  %582 = vmatpush.bf16.msra.mxu0 %v561
  %583 = vmatpush.bf16.msra.mxu0 %v560
  %584 = vmatmul.bf16.gmra.mxu0 %v507
  %v585 = vpop.f32.mrf.mxu0
  %v586 = vadd.f32 %v526, %v585
  %v587 = vpop.f32.mrf.mxu0
  %v588 = vadd.f32 %v526, %v587
  %589 = vdwg.mxu0
  %v590 = vadd.f32 %v449, %v586
  %v591 = vadd.f32 %v450, %v588
  %v592 = vld [vmem:[%s14] sm:$0x1]
  %v593 = vld [vmem:[%s15] sm:$0x1]
  %v594 = vsel %vm70, %v590, 0.0
  %595 = vadd.xlane.f32.xlu0 %v594
  %v596 = vpop.xlane.xlu0 %595
  %v597 = vsel %vm70, %v591, 0.0
  %598 = vadd.xlane.f32.xlu0 %v597
  %v599 = vpop.xlane.xlu0 %598
  %v600 = vmul.f32 %v596, %v83
  %v601 = vmul.f32 %v599, %v83
  %v602 = vsub.f32 %v590, %v600
  %v603 = vsub.f32 %v591, %v601
  %v604 = vmul.f32 %v602, %v602
  %v605 = vmul.f32 %v603, %v603
  %v606 = vsel %vm70, %v604, 0.0
  %607 = vadd.xlane.f32.xlu0 %v606
  %v608 = vpop.xlane.xlu0 %607
  %v609 = vsel %vm70, %v605, 0.0
  %610 = vadd.xlane.f32.xlu0 %v609
  %v611 = vpop.xlane.xlu0 %610
  %v612 = vmul.f32 %v608, %v83
  %v613 = vmul.f32 %v611, %v83
  %v614 = vadd.f32 %v612, 1e-12
  %v615 = vadd.f32 %v613, 1e-12
  %v616 = vrsqrt.pop %v614
  %v617 = vmul.f32 %v616, %v614
  %v618 = vmul.f32 %v617, %v616
  %v619 = vmul.f32 0.5, %v618
  %v620 = vsub.f32 1.5, %v619
  %v621 = vmul.f32 %v616, %v620
  %vm622 = vweird.f32 %v614
  %vm623 = vweird.f32 %v616
  %vm624 = vmor %vm622, %vm623
  %v625 = vsel %vm624, %v616, %v621
  %v626 = vrsqrt.pop %v615
  %v627 = vmul.f32 %v626, %v615
  %v628 = vmul.f32 %v627, %v626
  %v629 = vmul.f32 0.5, %v628
  %v630 = vsub.f32 1.5, %v629
  %v631 = vmul.f32 %v626, %v630
  %vm632 = vweird.f32 %v615
  %vm633 = vweird.f32 %v626
  %vm634 = vmor %vm632, %vm633
  %v635 = vsel %vm634, %v626, %v631
  %v636 = vmul.f32 %v602, %v625
  %v637 = vmul.f32 %v603, %v635
  %v639 = vperm.slane %v592, 0
  %v641 = vmul.f32 %v636, %v639
  %v642 = vmul.f32 %v637, %v639
  %v644 = vperm.slane %v593, 0
  %v646 = vadd.f32 %v641, %v644
  %v647 = vadd.f32 %v642, %v644
  %v648 = vpack.c.bf16 %v647, %v646
  %s649 = scalar_lea.vmem %s4, 16
  %v650 = vld [vmem:[%s649] sm:$0xf]
  %v651 = vld [vmem:[%s649 + $0x4] sm:$0xf]
  %v652 = vld [vmem:[%s649 + $0x8] sm:$0xf]
  %v653 = vld [vmem:[%s649 + $0xc] sm:$0xf]
  %s654 = scalar_lea.vmem %s5, 1
  %v655 = vld [vmem:[%s654] sm:$0x1]
  %v657 = vperm.slane %v655, 0
  %v663 = vunpack.c.l.b16 %v650
  %v664 = vunpack.c.l.b16 %v651
  %v665 = vunpack.c.l.b16 %v652
  %v666 = vunpack.c.l.b16 %v653
  %v667 = vpack.c.b16 %v664, %v663
  %v668 = vpack.c.b16 %v666, %v665
  %v672 = vsel %vm70, %v648, 0
  %674 = vmatpush.bf16.msra.mxu0 0
  %675 = vmatpush.bf16.msra.mxu0 0
  %676 = vmatpush.bf16.msra.mxu0 0
  %677 = vmatpush.bf16.msra.mxu0 0
  %678 = vmatpush.bf16.msra.mxu0 0
  %679 = vmatpush.bf16.msra.mxu0 0
  %680 = vmatpush.bf16.msra.mxu0 %v668
  %681 = vmatpush.bf16.msra.mxu0 %v667
  %682 = vmatmul.bf16.gmra.mxu0 %v672
  %v683 = vpop.f32.mrf.mxu0
  %v684 = vadd.f32 %v657, %v683
  %v685 = vpop.f32.mrf.mxu0
  %v686 = vadd.f32 %v657, %v685
  %687 = vdwg.mxu0
  %690 = vrot.lane.b32.xlu0 %v684, 112
  %v691 = vpop.permute.xlu0 %690
  %692 = vrot.lane.b32.xlu0 %v686, 112
  %v693 = vpop.permute.xlu0 %692
  %v696 = vpack.c.bf16 %v684, %v684
  %v697 = vpack.c.bf16 %v686, %v686
  %v698 = vpack.c.bf16 %v691, %v691
  %v699 = vpack.c.bf16 %v693, %v693
  %v702 = vunpack.c.l.b16 %v696
  %v703 = vunpack.c.l.b16 %v697
  %v704 = vpack.c.b16 %v703, %v702
  %705 = vrot.lane.b32.xlu0 %v704, 96
  %v706 = vpop.permute.xlu0 %705
  %v708 = vsel %vm191, %v704, 0
  %v711 = vsel %vm191, %v706, 0
  %713 = vmatpush.bf16.xpose.msra.mxu0 0
  %714 = vmatpush.bf16.xpose.msra.mxu0 0
  %715 = vmatpush.bf16.xpose.msra.mxu0 0
  %716 = vmatpush.bf16.xpose.msra.mxu0 0
  %717 = vmatpush.bf16.xpose.msra.mxu0 0
  %718 = vmatpush.bf16.xpose.msra.mxu0 0
  %719 = vmatpush.bf16.xpose.msra.mxu0 0
  %720 = vmatpush.bf16.xpose.msra.mxu0 %v711
  %721 = vmatmul.bf16.gmra.mxu0 %v708
  %v722 = vpop.f32.mrf.mxu0
  %v723 = vadd.f32 0.0, %v722
  %v724 = vpop.f32.mrf.mxu0
  %v725 = vadd.f32 0.0, %v724
  %726 = vdwg.mxu0
  %v729 = vunpack.c.l.b16 %v698
  %v730 = vunpack.c.l.b16 %v699
  %v731 = vpack.c.b16 %v730, %v729
  %732 = vrot.lane.b32.xlu0 %v731, 96
  %v733 = vpop.permute.xlu0 %732
  %v735 = vsel %vm191, %v731, 0
  %v738 = vsel %vm191, %v733, 0
  %740 = vmatpush.bf16.xpose.msra.mxu0 0
  %741 = vmatpush.bf16.xpose.msra.mxu0 0
  %742 = vmatpush.bf16.xpose.msra.mxu0 0
  %743 = vmatpush.bf16.xpose.msra.mxu0 0
  %744 = vmatpush.bf16.xpose.msra.mxu0 0
  %745 = vmatpush.bf16.xpose.msra.mxu0 0
  %746 = vmatpush.bf16.xpose.msra.mxu0 0
  %747 = vmatpush.bf16.xpose.msra.mxu0 %v738
  %748 = vmatmul.bf16.gmra.mxu0 %v735
  %v749 = vpop.f32.mrf.mxu0
  %v750 = vadd.f32 0.0, %v749
  %v751 = vpop.f32.mrf.mxu0
  %v752 = vadd.f32 0.0, %v751
  %753 = vdwg.mxu0
  %v754 = vmul.f32 %v723, 0.25
  %v755 = vmul.f32 %v725, 0.25
  %v756 = vmul.f32 %v750, 0.25
  %v757 = vmul.f32 %v752, 0.25
  %v758 = vadd.f32 %v754, %v132
  %v759 = vadd.f32 %v755, %v133
  %v760 = vadd.f32 %v756, %v132
  %v761 = vadd.f32 %v757, %v133
  %v762 = vsel %vm191, %v758, -inf
  %763 = vmax.xlane.f32.xlu0 %v762
  %v764 = vpop.xlane.xlu0 %763
  %v765 = vsel %vm191, %v759, -inf
  %766 = vmax.xlane.f32.xlu0 %v765
  %v767 = vpop.xlane.xlu0 %766
  %v768 = vsel %vm191, %v760, -inf
  %769 = vmax.xlane.f32.xlu0 %v768
  %v770 = vpop.xlane.xlu0 %769
  %v771 = vsel %vm191, %v761, -inf
  %772 = vmax.xlane.f32.xlu0 %v771
  %v773 = vpop.xlane.xlu0 %772
  %v774 = vsub.f32 %v758, %v764
  %v775 = vsub.f32 %v759, %v767
  %v776 = vsub.f32 %v760, %v770
  %v777 = vsub.f32 %v761, %v773
  %v778 = vmul.f32 %v774, 1.442695
  %v779 = vpow.pop %v778
  %v780 = vmul.f32 %v775, 1.442695
  %v781 = vpow.pop %v780
  %v782 = vmul.f32 %v776, 1.442695
  %v783 = vpow.pop %v782
  %v784 = vmul.f32 %v777, 1.442695
  %v785 = vpow.pop %v784
  %v786 = vsel %vm191, %v779, 0.0
  %787 = vadd.xlane.f32.xlu0 %v786
  %v788 = vpop.xlane.xlu0 %787
  %v789 = vsel %vm191, %v781, 0.0
  %790 = vadd.xlane.f32.xlu0 %v789
  %v791 = vpop.xlane.xlu0 %790
  %v792 = vsel %vm191, %v783, 0.0
  %793 = vadd.xlane.f32.xlu0 %v792
  %v794 = vpop.xlane.xlu0 %793
  %v795 = vsel %vm191, %v785, 0.0
  %796 = vadd.xlane.f32.xlu0 %v795
  %v797 = vpop.xlane.xlu0 %796
  %v798 = vrcp.pop %v788
  %v799 = vrcp.pop %v791
  %v800 = vrcp.pop %v794
  %v801 = vrcp.pop %v797
  %v802 = vmul.f32 %v779, %v798
  %v803 = vmul.f32 %v781, %v799
  %v804 = vmul.f32 %v783, %v800
  %v805 = vmul.f32 %v785, %v801
  %v806 = vpack.c.bf16 %v802, %v802
  %v807 = vpack.c.bf16 %v803, %v803
  %v808 = vpack.c.bf16 %v804, %v804
  %v809 = vpack.c.bf16 %v805, %v805
  %v812 = vunpack.c.l.b16 %v806
  %v813 = vunpack.c.l.b16 %v807
  %v814 = vpack.c.b16 %v813, %v812
  %815 = vrot.lane.b32.xlu0 %v704, 64
  %v816 = vpop.permute.xlu0 %815
  %v819 = vsel %vm191, %v814, 0
  %821 = vmatpush.bf16.msra.mxu0 0
  %822 = vmatpush.bf16.msra.mxu0 0
  %823 = vmatpush.bf16.msra.mxu0 0
  %824 = vmatpush.bf16.msra.mxu0 0
  %825 = vmatpush.bf16.msra.mxu0 0
  %826 = vmatpush.bf16.msra.mxu0 0
  %827 = vmatpush.bf16.msra.mxu0 0
  %828 = vmatpush.bf16.msra.mxu0 %v816
  %829 = vmatmul.bf16.gmra.mxu0 %v819
  %v830 = vpop.f32.mrf.mxu0
  %v831 = vadd.f32 0.0, %v830
  %v832 = vpop.f32.mrf.mxu0
  %v833 = vadd.f32 0.0, %v832
  %834 = vdwg.mxu0
  %v837 = vunpack.c.l.b16 %v808
  %v838 = vunpack.c.l.b16 %v809
  %v839 = vpack.c.b16 %v838, %v837
  %840 = vrot.lane.b32.xlu0 %v731, 64
  %v841 = vpop.permute.xlu0 %840
  %v844 = vsel %vm191, %v839, 0
  %846 = vmatpush.bf16.msra.mxu0 0
  %847 = vmatpush.bf16.msra.mxu0 0
  %848 = vmatpush.bf16.msra.mxu0 0
  %849 = vmatpush.bf16.msra.mxu0 0
  %850 = vmatpush.bf16.msra.mxu0 0
  %851 = vmatpush.bf16.msra.mxu0 0
  %852 = vmatpush.bf16.msra.mxu0 0
  %853 = vmatpush.bf16.msra.mxu0 %v841
  %854 = vmatmul.bf16.gmra.mxu0 %v844
  %v855 = vpop.f32.mrf.mxu0
  %v856 = vadd.f32 0.0, %v855
  %v857 = vpop.f32.mrf.mxu0
  %v858 = vadd.f32 0.0, %v857
  %859 = vdwg.mxu0
  %862 = vrot.lane.b32.xlu0 %v856, 16
  %v863 = vpop.permute.xlu0 %862
  %864 = vrot.lane.b32.xlu0 %v858, 16
  %v865 = vpop.permute.xlu0 %864
  %v868 = vsel %vm191, %v831, %v863
  %v869 = vsel %vm191, %v833, %v865
  %v870 = vpack.c.bf16 %v869, %v868
  %s871 = scalar_lea.vmem %s6, 16
  %v872 = vld [vmem:[%s871] sm:$0xf]
  %v873 = vld [vmem:[%s871 + $0x4] sm:$0xf]
  %v874 = vld [vmem:[%s871 + $0x8] sm:$0xf]
  %v875 = vld [vmem:[%s871 + $0xc] sm:$0xf]
  %s876 = scalar_lea.vmem %s7, 1
  %v877 = vld [vmem:[%s876] sm:$0x1]
  %v879 = vperm.slane %v877, 0
  %v885 = vunpack.c.l.b16 %v872
  %v886 = vunpack.c.l.b16 %v873
  %v887 = vunpack.c.l.b16 %v874
  %v888 = vunpack.c.l.b16 %v875
  %v889 = vpack.c.b16 %v886, %v885
  %v890 = vpack.c.b16 %v888, %v887
  %v894 = vsel %vm70, %v870, 0
  %896 = vmatpush.bf16.msra.mxu0 0
  %897 = vmatpush.bf16.msra.mxu0 0
  %898 = vmatpush.bf16.msra.mxu0 0
  %899 = vmatpush.bf16.msra.mxu0 0
  %900 = vmatpush.bf16.msra.mxu0 0
  %901 = vmatpush.bf16.msra.mxu0 0
  %902 = vmatpush.bf16.msra.mxu0 %v890
  %903 = vmatpush.bf16.msra.mxu0 %v889
  %904 = vmatmul.bf16.gmra.mxu0 %v894
  %v905 = vpop.f32.mrf.mxu0
  %v906 = vadd.f32 %v879, %v905
  %v907 = vpop.f32.mrf.mxu0
  %v908 = vadd.f32 %v879, %v907
  %909 = vdwg.mxu0
  %v910 = vadd.f32 %v646, %v906
  %v911 = vadd.f32 %v647, %v908
  %s912 = scalar_lea.vmem %s8, 1
  %v913 = vld [vmem:[%s912] sm:$0x1]
  %s914 = scalar_lea.vmem %s9, 1
  %v915 = vld [vmem:[%s914] sm:$0x1]
  %v916 = vsel %vm70, %v910, 0.0
  %917 = vadd.xlane.f32.xlu0 %v916
  %v918 = vpop.xlane.xlu0 %917
  %v919 = vsel %vm70, %v911, 0.0
  %920 = vadd.xlane.f32.xlu0 %v919
  %v921 = vpop.xlane.xlu0 %920
  %v922 = vmul.f32 %v918, %v83
  %v923 = vmul.f32 %v921, %v83
  %v924 = vsub.f32 %v910, %v922
  %v925 = vsub.f32 %v911, %v923
  %v926 = vmul.f32 %v924, %v924
  %v927 = vmul.f32 %v925, %v925
  %v928 = vsel %vm70, %v926, 0.0
  %929 = vadd.xlane.f32.xlu0 %v928
  %v930 = vpop.xlane.xlu0 %929
  %v931 = vsel %vm70, %v927, 0.0
  %932 = vadd.xlane.f32.xlu0 %v931
  %v933 = vpop.xlane.xlu0 %932
  %v934 = vmul.f32 %v930, %v83
  %v935 = vmul.f32 %v933, %v83
  %v936 = vadd.f32 %v934, 1e-12
  %v937 = vadd.f32 %v935, 1e-12
  %v938 = vrsqrt.pop %v936
  %v939 = vmul.f32 %v938, %v936
  %v940 = vmul.f32 %v939, %v938
  %v941 = vmul.f32 0.5, %v940
  %v942 = vsub.f32 1.5, %v941
  %v943 = vmul.f32 %v938, %v942
  %vm944 = vweird.f32 %v936
  %vm945 = vweird.f32 %v938
  %vm946 = vmor %vm944, %vm945
  %v947 = vsel %vm946, %v938, %v943
  %v948 = vrsqrt.pop %v937
  %v949 = vmul.f32 %v948, %v937
  %v950 = vmul.f32 %v949, %v948
  %v951 = vmul.f32 0.5, %v950
  %v952 = vsub.f32 1.5, %v951
  %v953 = vmul.f32 %v948, %v952
  %vm954 = vweird.f32 %v937
  %vm955 = vweird.f32 %v948
  %vm956 = vmor %vm954, %vm955
  %v957 = vsel %vm956, %v948, %v953
  %v958 = vmul.f32 %v924, %v947
  %v959 = vmul.f32 %v925, %v957
  %v961 = vperm.slane %v913, 0
  %v963 = vmul.f32 %v958, %v961
  %v964 = vmul.f32 %v959, %v961
  %v966 = vperm.slane %v915, 0
  %v968 = vadd.f32 %v963, %v966
  %v969 = vadd.f32 %v964, %v966
  %v970 = vpack.c.bf16 %v969, %v968
  %s971 = scalar_lea.vmem %s10, 16
  %v972 = vld [vmem:[%s971] sm:$0xf]
  %v973 = vld [vmem:[%s971 + $0x4] sm:$0xf]
  %v974 = vld [vmem:[%s971 + $0x8] sm:$0xf]
  %v975 = vld [vmem:[%s971 + $0xc] sm:$0xf]
  %s976 = scalar_lea.vmem %s11, 1
  %v977 = vld [vmem:[%s976] sm:$0x1]
  %v979 = vperm.slane %v977, 0
  %v985 = vunpack.c.l.b16 %v972
  %v986 = vunpack.c.l.b16 %v973
  %v987 = vunpack.c.l.b16 %v974
  %v988 = vunpack.c.l.b16 %v975
  %v989 = vpack.c.b16 %v986, %v985
  %v990 = vpack.c.b16 %v988, %v987
  %v994 = vsel %vm70, %v970, 0
  %996 = vmatpush.bf16.msra.mxu0 0
  %997 = vmatpush.bf16.msra.mxu0 0
  %998 = vmatpush.bf16.msra.mxu0 0
  %999 = vmatpush.bf16.msra.mxu0 0
  %1000 = vmatpush.bf16.msra.mxu0 0
  %1001 = vmatpush.bf16.msra.mxu0 0
  %1002 = vmatpush.bf16.msra.mxu0 %v990
  %1003 = vmatpush.bf16.msra.mxu0 %v989
  %1004 = vmatmul.bf16.gmra.mxu0 %v994
  %v1005 = vpop.f32.mrf.mxu0
  %v1006 = vadd.f32 %v979, %v1005
  %v1007 = vpop.f32.mrf.mxu0
  %v1008 = vadd.f32 %v979, %v1007
  %1009 = vdwg.mxu0
  %v1010 = vmul.f32 %v1006, %v1006
  %v1011 = vmul.f32 %v1008, %v1008
  %v1012 = vmul.f32 %v1006, %v1010
  %v1013 = vmul.f32 %v1008, %v1011
  %v1014 = vmul.f32 %v1012, 0.044715
  %v1015 = vmul.f32 %v1013, 0.044715
  %v1016 = vadd.f32 %v1006, %v1014
  %v1017 = vadd.f32 %v1008, %v1015
  %v1018 = vmul.f32 %v1016, 0.7978846
  %v1019 = vmul.f32 %v1017, 0.7978846
  %v1020 = vtanh.pop %v1018
  %v1021 = vtanh.pop %v1019
  %v1022 = vadd.f32 %v1020, 1.0
  %v1023 = vadd.f32 %v1021, 1.0
  %v1024 = vmul.f32 %v1022, 0.5
  %v1025 = vmul.f32 %v1023, 0.5
  %v1026 = vmul.f32 %v1006, %v1024
  %v1027 = vmul.f32 %v1008, %v1025
  %v1028 = vpack.c.bf16 %v1027, %v1026
  %s1029 = scalar_lea.vmem %s12, 64
  %v1030 = vld [vmem:[%s1029] sm:$0xf]
  %v1031 = vld [vmem:[%s1029 + $0x4] sm:$0xf]
  %v1032 = vld [vmem:[%s1029 + $0x8] sm:$0xf]
  %v1033 = vld [vmem:[%s1029 + $0xc] sm:$0xf]
  %v1034 = vld [vmem:[%s1029 + $0x10] sm:$0xf]
  %v1035 = vld [vmem:[%s1029 + $0x14] sm:$0xf]
  %v1036 = vld [vmem:[%s1029 + $0x18] sm:$0xf]
  %v1037 = vld [vmem:[%s1029 + $0x1c] sm:$0xf]
  %v1038 = vld [vmem:[%s1029 + $0x20] sm:$0xf]
  %v1039 = vld [vmem:[%s1029 + $0x24] sm:$0xf]
  %v1040 = vld [vmem:[%s1029 + $0x28] sm:$0xf]
  %v1041 = vld [vmem:[%s1029 + $0x2c] sm:$0xf]
  %v1042 = vld [vmem:[%s1029 + $0x30] sm:$0xf]
  %v1043 = vld [vmem:[%s1029 + $0x34] sm:$0xf]
  %v1044 = vld [vmem:[%s1029 + $0x38] sm:$0xf]
  %v1045 = vld [vmem:[%s1029 + $0x3c] sm:$0xf]
  %s1046 = scalar_lea.vmem %s13, 1
  %v1047 = vld [vmem:[%s1046] sm:$0x1]
  %v1049 = vperm.slane %v1047, 0
  %v1067 = vunpack.c.l.b16 %v1030
  %v1068 = vunpack.c.l.b16 %v1031
  %v1069 = vunpack.c.l.b16 %v1032
  %v1070 = vunpack.c.l.b16 %v1033
  %v1071 = vunpack.c.l.b16 %v1034
  %v1072 = vunpack.c.l.b16 %v1035
  %v1073 = vunpack.c.l.b16 %v1036
  %v1074 = vunpack.c.l.b16 %v1037
  %v1075 = vunpack.c.l.b16 %v1038
  %v1076 = vunpack.c.l.b16 %v1039
  %v1077 = vunpack.c.l.b16 %v1040
  %v1078 = vunpack.c.l.b16 %v1041
  %v1079 = vunpack.c.l.b16 %v1042
  %v1080 = vunpack.c.l.b16 %v1043
  %v1081 = vunpack.c.l.b16 %v1044
  %v1082 = vunpack.c.l.b16 %v1045
  %v1083 = vpack.c.b16 %v1068, %v1067
  %v1084 = vpack.c.b16 %v1070, %v1069
  %v1085 = vpack.c.b16 %v1072, %v1071
  %v1086 = vpack.c.b16 %v1074, %v1073
  %v1087 = vpack.c.b16 %v1076, %v1075
  %v1088 = vpack.c.b16 %v1078, %v1077
  %v1089 = vpack.c.b16 %v1080, %v1079
  %v1090 = vpack.c.b16 %v1082, %v1081
  %1099 = vmatpush.bf16.msra.mxu0 %v1090
  %1100 = vmatpush.bf16.msra.mxu0 %v1089
  %1101 = vmatpush.bf16.msra.mxu0 %v1088
  %1102 = vmatpush.bf16.msra.mxu0 %v1087
  %1103 = vmatpush.bf16.msra.mxu0 %v1086
  %1104 = vmatpush.bf16.msra.mxu0 %v1085
  %1105 = vmatpush.bf16.msra.mxu0 %v1084
  %1106 = vmatpush.bf16.msra.mxu0 %v1083
  %1107 = vmatmul.bf16.gmra.mxu0 %v1028
  %v1108 = vpop.f32.mrf.mxu0
  %v1109 = vadd.f32 %v1049, %v1108
  %v1110 = vpop.f32.mrf.mxu0
  %v1111 = vadd.f32 %v1049, %v1110
  %1112 = vdwg.mxu0
  %v1113 = vadd.f32 %v968, %v1109
  %v1114 = vadd.f32 %v969, %v1111
  %s1115 = scalar_lea.vmem %s14, 1
  %v1116 = vld [vmem:[%s1115] sm:$0x1]
  %s1117 = scalar_lea.vmem %s15, 1
  %v1118 = vld [vmem:[%s1117] sm:$0x1]
  %v1119 = vsel %vm70, %v1113, 0.0
  %1120 = vadd.xlane.f32.xlu0 %v1119
  %v1121 = vpop.xlane.xlu0 %1120
  %v1122 = vsel %vm70, %v1114, 0.0
  %1123 = vadd.xlane.f32.xlu0 %v1122
  %v1124 = vpop.xlane.xlu0 %1123
  %v1125 = vmul.f32 %v1121, %v83
  %v1126 = vmul.f32 %v1124, %v83
  %v1127 = vsub.f32 %v1113, %v1125
  %v1128 = vsub.f32 %v1114, %v1126
  %v1129 = vmul.f32 %v1127, %v1127
  %v1130 = vmul.f32 %v1128, %v1128
  %v1131 = vsel %vm70, %v1129, 0.0
  %1132 = vadd.xlane.f32.xlu0 %v1131
  %v1133 = vpop.xlane.xlu0 %1132
  %v1134 = vsel %vm70, %v1130, 0.0
  %1135 = vadd.xlane.f32.xlu0 %v1134
  %v1136 = vpop.xlane.xlu0 %1135
  %v1137 = vmul.f32 %v1133, %v83
  %v1138 = vmul.f32 %v1136, %v83
  %v1139 = vadd.f32 %v1137, 1e-12
  %v1140 = vadd.f32 %v1138, 1e-12
  %v1141 = vrsqrt.pop %v1139
  %v1142 = vmul.f32 %v1141, %v1139
  %v1143 = vmul.f32 %v1142, %v1141
  %v1144 = vmul.f32 0.5, %v1143
  %v1145 = vsub.f32 1.5, %v1144
  %v1146 = vmul.f32 %v1141, %v1145
  %vm1147 = vweird.f32 %v1139
  %vm1148 = vweird.f32 %v1141
  %vm1149 = vmor %vm1147, %vm1148
  %v1150 = vsel %vm1149, %v1141, %v1146
  %v1151 = vrsqrt.pop %v1140
  %v1152 = vmul.f32 %v1151, %v1140
  %v1153 = vmul.f32 %v1152, %v1151
  %v1154 = vmul.f32 0.5, %v1153
  %v1155 = vsub.f32 1.5, %v1154
  %v1156 = vmul.f32 %v1151, %v1155
  %vm1157 = vweird.f32 %v1140
  %vm1158 = vweird.f32 %v1151
  %vm1159 = vmor %vm1157, %vm1158
  %v1160 = vsel %vm1159, %v1151, %v1156
  %v1161 = vmul.f32 %v1127, %v1150
  %v1162 = vmul.f32 %v1128, %v1160
  %v1164 = vperm.slane %v1116, 0
  %v1166 = vmul.f32 %v1161, %v1164
  %v1167 = vmul.f32 %v1162, %v1164
  %v1169 = vperm.slane %v1118, 0
  %v1171 = vadd.f32 %v1166, %v1169
  %v1172 = vadd.f32 %v1167, %v1169
  %v1173 = vpack.c.bf16 %v1172, %v1171
  %v1174 = vld [vmem:[%s16] sm:$0xf]
  %v1175 = vld [vmem:[%s16 + $0x4] sm:$0xf]
  %v1176 = vld [vmem:[%s16 + $0x8] sm:$0xf]
  %v1177 = vld [vmem:[%s16 + $0xc] sm:$0xf]
  %v1178 = vld [vmem:[%s17] sm:$0x1]
  %v1180 = vperm.slane %v1178, 0
  %v1186 = vunpack.c.l.b16 %v1174
  %v1187 = vunpack.c.l.b16 %v1175
  %v1188 = vunpack.c.l.b16 %v1176
  %v1189 = vunpack.c.l.b16 %v1177
  %v1190 = vpack.c.b16 %v1187, %v1186
  %v1191 = vpack.c.b16 %v1189, %v1188
  %v1195 = vsel %vm70, %v1173, 0
  %1197 = vmatpush.bf16.msra.mxu0 0
  %1198 = vmatpush.bf16.msra.mxu0 0
  %1199 = vmatpush.bf16.msra.mxu0 0
  %1200 = vmatpush.bf16.msra.mxu0 0
  %1201 = vmatpush.bf16.msra.mxu0 0
  %1202 = vmatpush.bf16.msra.mxu0 0
  %1203 = vmatpush.bf16.msra.mxu0 %v1191
  %1204 = vmatpush.bf16.msra.mxu0 %v1190
  %1205 = vmatmul.bf16.gmra.mxu0 %v1195
  %v1206 = vpop.f32.mrf.mxu0
  %v1207 = vadd.f32 %v1180, %v1206
  %v1208 = vpop.f32.mrf.mxu0
  %v1209 = vadd.f32 %v1180, %v1208
  %1210 = vdwg.mxu0
  %v1211 = vtanh.pop %v1207
  %v1212 = vtanh.pop %v1209
  %v1213 = vpack.c.bf16 %v1212, %v1211
  %v1214 = vld [vmem:[%s18] sm:$0xf]
  %v1215 = vld [vmem:[%s18 + $0x4] sm:$0xf]
  %v1216 = vld [vmem:[%s18 + $0x8] sm:$0xf]
  %v1217 = vld [vmem:[%s18 + $0xc] sm:$0xf]
  %v1218 = vld [vmem:[%s19] sm:$0x1]
  %v1220 = vperm.slane %v1218, 0
  %v1226 = vunpack.c.l.b16 %v1214
  %v1227 = vunpack.c.l.b16 %v1215
  %v1228 = vunpack.c.l.b16 %v1216
  %v1229 = vunpack.c.l.b16 %v1217
  %v1230 = vpack.c.b16 %v1227, %v1226
  %v1231 = vpack.c.b16 %v1229, %v1228
  %v1235 = vsel %vm70, %v1213, 0
  %1237 = vmatpush.bf16.msra.mxu0 0
  %1238 = vmatpush.bf16.msra.mxu0 0
  %1239 = vmatpush.bf16.msra.mxu0 0
  %1240 = vmatpush.bf16.msra.mxu0 0
  %1241 = vmatpush.bf16.msra.mxu0 0
  %1242 = vmatpush.bf16.msra.mxu0 0
  %1243 = vmatpush.bf16.msra.mxu0 %v1231
  %1244 = vmatpush.bf16.msra.mxu0 %v1230
  %1245 = vmatmul.bf16.gmra.mxu0 %v1235
  %v1246 = vpop.f32.mrf.mxu0
  %v1247 = vadd.f32 %v1220, %v1246
  %v1248 = vpop.f32.mrf.mxu0
  %v1249 = vadd.f32 %v1220, %v1248
  %1250 = vdwg.mxu0
  %1251 = vst [vmem:[%s20] sm:$0xff] %v1247
  %1252 = vst [vmem:[%s20 + $0x8] sm:$0xff] %v1249
  // Predicated region
  $region82: #{forward.1} parent=0 // pred_check
    _
  $region83: #{forward.1} parent=0 // pred_check_branch
    %1254 = sbr.rel (0) target = $region85
  $region84: #{forward.1} parent=0 // pred_region
    _
  $region85: #{forward.1} parent=0 // pred_fallthru
    _
  // Predicated region
  $region86: #{forward.1} parent=0 // pred_check
    _
  $region87: #{forward.1} parent=0 // pred_check_branch
    %1256 = sbr.rel (0) target = $region89
  $region88: #{forward.1} parent=0 // pred_region
    _
  $region89: #{forward.1} parent=0 // pred_fallthru
    _

</llo_original>
